<compile_context>
chip_gen: v7x
topology: tpu7x:2x2x1
jax: 0.10.0
libtpu: 0.0.40
codegen_flags: <defaults>
</compile_context>

<pallas_src>
import functools

import jax
import jax.numpy as jnp
from jax import lax
from jax.experimental import pallas as pl
from jax.experimental.pallas import tpu as pltpu

_LANES = 128              # TPU lane width; output dim padded 13 -> 128.
_MAX_INFLIGHT_ROWS = 64   # target number of embedding-row DMAs kept in flight.


def _cdiv(a, b):
    return -(-a // b)


def _round_up(x, m):
    return _cdiv(x, m) * m


def _pick_lookahead(seq_len):
    """In-flight DMA depth, in whole batch rows (power of two).

    Total in-flight row copies = k * seq_len (one VMEM slot + one DMA
    semaphore each).  Keeping the depth a multiple of seq_len removes every
    div/mod from the per-row issue path: slot = (bi & (k-1)) * seq_len + si.
    """
    k = 1
    while k * 2 * seq_len <= _MAX_INFLIGHT_ROWS:
        k *= 2
    return k


def _pick_batch_tile(batch):
    """Batch-tile heuristic.

    With streamed pooling the per-tile VMEM footprint is tiny (~3 KB per batch
    row + ~0.4 MiB fixed), so VMEM no longer constrains the tile on any
    generation (v5e/v6e 128 MiB, v7x 64 MiB).  Pick the tile for
      (a) (8, 128) output-block alignment,
      (b) >= 2 grid steps so v7x's two TensorCores both get work,
      (c) a cap that keeps per-step scratch modest.
    """
    half = _round_up(_cdiv(batch, 2), 8)
    return min(max(half, 8), 512)


def _finetune_llm_kernel(ids_ref, bsz_ref, emb_hbm, w_ref, b_ref, o_ref,
                         gbuf, pooled_ref, sem, *,
                         batch_tile, seq_len, k_ahead):
    """One grid step: streamed embedding gather + mean pool + Linear.

    ids_ref    : SMEM (B_pad*S,)     int32   flattened token ids (scalar prefetch)
    bsz_ref    : SMEM (1,)           int32   true batch size (scalar prefetch)
    emb_hbm    : HBM  (V, D/2)       uint32  bf16-packed embedding table (ANY space)
    w_ref      : VMEM (D, 128)       bf16    weight, feature-permuted + lane-padded
    b_ref      : VMEM (1, 128)       f32     bias, zero lane-padded
    o_ref      : VMEM (TB, 128)      f32     padded logits for this batch tile
    gbuf       : VMEM (k*S, D/2)     uint32  rotating gather slots
    pooled_ref : VMEM (TB, D)        f32     pooled embeddings (kernel feature order)
    sem        : DMA semaphores      (k*S,)  one per slot
    """
    d_packed = gbuf.shape[-1]                      # D // 2 u32 words per row
    inv_s = 1.0 / seq_len
    hi_mask = jnp.uint32(0xFFFF0000)

    base_b = pl.program_id(0) * batch_tile
    base_flat = base_b * seq_len
    # Padded batch rows (beyond the true batch size) issue no DMAs at all.
    n_valid_b = jnp.minimum(jnp.maximum(bsz_ref[0] - base_b, 0), batch_tile)

    def issue(flat_idx, slot):
        tok = ids_ref[flat_idx]
        pltpu.make_async_copy(emb_hbm.at[pl.ds(tok, 1)],    # (1, D/2) HBM row
                              gbuf.at[pl.ds(slot, 1)],      # (1, D/2) VMEM slot
                              sem.at[slot]).start()

    # ---- prime the pipeline: first k_ahead valid batch rows of DMAs --------
    n_prime_b = jnp.minimum(k_ahead, n_valid_b)

    def prime_b(bi, carry):
        def prime_s(si, c):
            issue(base_flat + bi * seq_len + si, bi * seq_len + si)
            return c
        lax.fori_loop(0, seq_len, prime_s, 0)
        return carry

    lax.fori_loop(0, n_prime_b, prime_b, 0)

    # Padded batch rows keep deterministic (zero) pooled values.
    @pl.when(n_valid_b < batch_tile)
    def _():
        pooled_ref[...] = jnp.zeros_like(pooled_ref)

    # ---- streamed gather + mean pool: wait row, accumulate, refill slot ----
    def body_b(bi, carry):
        slot_b = (bi & (k_ahead - 1)) * seq_len
        next_bi = bi + k_ahead
        issue_next = next_bi < n_valid_b
        # Clamped so the hoisted SMEM read below is always in bounds.
        next_base = jnp.where(issue_next, base_flat + next_bi * seq_len, base_flat)

        def body_s(si, acc):
            acc_even, acc_odd = acc
            slot = slot_b + si
            # Read the next token id BEFORE the DMA wait (keeps the scalar
            # sst->sld path flowing; .wait() breaks SMEM forwarding).
            tok_next = ids_ref[next_base + si]

            pltpu.make_async_copy(emb_hbm.at[pl.ds(0, 1)],
                                  gbuf.at[pl.ds(slot, 1)],
                                  sem.at[slot]).wait()

            word = gbuf[pl.ds(slot, 1), :]                  # (1, D/2) u32
            # Unpack 2 x bf16 per word into f32 (bf16 value == its bits << 16).
            f_even = pltpu.bitcast(word << 16, jnp.float32)       # orig features 0,2,4,...
            f_odd = pltpu.bitcast(word & hi_mask, jnp.float32)    # orig features 1,3,5,...
            acc_even = acc_even + f_even
            acc_odd = acc_odd + f_odd

            # Re-use this slot for the row k_ahead batch rows ahead.
            @pl.when(issue_next)
            def _():
                pltpu.make_async_copy(emb_hbm.at[pl.ds(tok_next, 1)],
                                      gbuf.at[pl.ds(slot, 1)],
                                      sem.at[slot]).start()
            return acc_even, acc_odd

        zero = jnp.zeros((1, d_packed), jnp.float32)
        acc_even, acc_odd = lax.fori_loop(0, seq_len, body_s, (zero, zero))
        # Kernel feature order: [even original features | odd original features].
        pooled_ref[pl.ds(bi, 1), 0:d_packed] = acc_even * inv_s
        pooled_ref[pl.ds(bi, 1), d_packed:2 * d_packed] = acc_odd * inv_s
        return carry

    lax.fori_loop(0, n_valid_b, body_b, 0)

    # ---- Linear(768, 13): bf16 MXU matmul, f32 accumulation, dense 128-lane store
    pooled = pooled_ref[...].astype(jnp.bfloat16)                 # (TB, D)
    logits = jnp.dot(pooled, w_ref[...], preferred_element_type=jnp.float32)
    o_ref[...] = logits + b_ref[...]


def prepare_finetune_llm_params(emb_table, weight, bias):
    """One-time parameter prep (hoisted out of the per-call forward).

    * bf16-rounds the embedding table and packs feature pairs into u32 words
      (halves gather HBM bytes): word j = bits(f[2j]) | bits(f[2j+1]) << 16.
    * Permutes the Linear weight rows into the kernel's [even | odd] feature
      order and lane-pads 13 -> 128 output columns (zero padding is inert).
    """
    V, D = emb_table.shape
    O, D2 = weight.shape
    assert D == D2 and D % 2 == 0 and O <= _LANES

    tab_f32 = emb_table.astype(jnp.bfloat16).astype(jnp.float32)     # bf16-rounded values
    bits = lax.bitcast_convert_type(tab_f32, jnp.uint32)             # low 16 bits are zero
    packed = (bits[:, 0::2] >> 16) | (bits[:, 1::2] & jnp.uint32(0xFFFF0000))  # (V, D/2)

    w_t = weight.T.astype(jnp.bfloat16)                               # (D, O)
    w_perm = jnp.concatenate([w_t[0::2, :], w_t[1::2, :]], axis=0)    # kernel feature order
    w_pad = jnp.zeros((D, _LANES), jnp.bfloat16).at[:, :O].set(w_perm)
    b_pad = jnp.zeros((1, _LANES), jnp.float32).at[0, :O].set(bias.astype(jnp.float32))
    return packed, w_pad, b_pad, O


def finetune_llm_forward(token_ids, packed_table, w_pad, b_pad, out_dim, *,
                         batch_tile=None):
    """Finetune_LLM hot path: embedding lookup -> mean pool -> Linear(768, 13).

    token_ids    : (B, S) int32    stand-in for tokenized `text_input`
    packed_table : (V, D/2) uint32 bf16-packed embedding table (prepared)
    w_pad, b_pad : prepared Linear params;  out_dim: true output dim (13)
    returns      : (B, out_dim) f32 logits
    """
    B, S = token_ids.shape
    Dp = packed_table.shape[1]
    D = 2 * Dp

    if batch_tile is None:
        tb = _pick_batch_tile(B)
    else:
        tb = max(8, _round_up(int(batch_tile), 8))   # keep (8,128) block legal
    B_pad = _round_up(B, tb)
    grid = B_pad // tb

    k_ahead = _pick_lookahead(S)
    n_slots = k_ahead * S
    # TODO(synk): for very long sequences (S >> 128) the per-slot semaphore
    #             count should be capped by chunking the inner pipeline.

    ids_flat = jnp.zeros((B_pad * S,), jnp.int32)
    ids_flat = ids_flat.at[:B * S].set(token_ids.astype(jnp.int32).reshape(-1))
    bsz = jnp.array([B], jnp.int32)

    kernel = functools.partial(_finetune_llm_kernel,
                               batch_tile=tb, seq_len=S, k_ahead=k_ahead)

    out_pad = pl.pallas_call(
        kernel,
        out_shape=jax.ShapeDtypeStruct((B_pad, _LANES), jnp.float32),
        grid_spec=pltpu.PrefetchScalarGridSpec(
            num_scalar_prefetch=2,                         # ids + true batch size
            grid=(grid,),
            in_specs=[
                pl.BlockSpec(memory_space=pl.ANY),                        # packed table (HBM)
                pl.BlockSpec((D, _LANES), lambda b, ids, bs: (0, 0)),     # weight
                pl.BlockSpec((1, _LANES), lambda b, ids, bs: (0, 0)),     # bias
            ],
            out_specs=pl.BlockSpec((tb, _LANES), lambda b, ids, bs: (b, 0)),
            scratch_shapes=[
                pltpu.VMEM((n_slots, Dp), jnp.uint32),     # rotating gather slots
                pltpu.VMEM((tb, D), jnp.float32),          # pooled embeddings
                pltpu.SemaphoreType.DMA((n_slots,)),       # one semaphore per slot
            ],
        ),
        compiler_params=pltpu.CompilerParams(
            # Batch axis is embarrassingly parallel -> shards across v7x's 2 TCs.
            dimension_semantics=("parallel",),
            vmem_limit_bytes=32 * 1024 * 1024,
        ),
    )(ids_flat, bsz, packed_table, w_pad, b_pad)

    return out_pad[:B, :out_dim]


if __name__ == "__main__":
    key = jax.random.PRNGKey(0)
    k_tok, k_tab, k_w, k_b = jax.random.split(key, 4)

    # Small, forward-consistent shapes (D=768/O=13 fixed by nn.Linear(768, 13)).
    B, S, D, O, V = 16, 16, 768, 13, 1000

    token_ids = jax.random.randint(k_tok, (B, S), 0, V, dtype=jnp.int32)
    emb_table = jax.random.normal(k_tab, (V, D), dtype=jnp.float32) * 0.02

    bound = 1.0 / jnp.sqrt(jnp.float32(D))
    weight = jax.random.uniform(k_w, (O, D), jnp.float32, -bound, bound)   # [O, D]
    bias = jax.random.uniform(k_b, (O,), jnp.float32, -bound, bound)       # [O]

    packed, w_pad, b_pad, out_dim = prepare_finetune_llm_params(emb_table, weight, bias)

    # Auto tile -> tb=8, grid=2 (multi-step, both TCs); explicit tile=16 -> grid=1;
    # B=11 -> last tile has 3 valid rows (exercises the padded-row DMA skip).
    out_auto = jax.block_until_ready(
        finetune_llm_forward(token_ids, packed, w_pad, b_pad, out_dim))
    out_one = jax.block_until_ready(
        finetune_llm_forward(token_ids, packed, w_pad, b_pad, out_dim, batch_tile=16))
    out_odd = jax.block_until_ready(
        finetune_llm_forward(token_ids[:11], packed, w_pad, b_pad, out_dim))

    # Reference (same numerics: bf16-rounded table, f32 pool, bf16 MXU matmul).
    tab_q = emb_table.astype(jnp.bfloat16).astype(jnp.float32)
    pooled_ref = jnp.mean(tab_q[token_ids], axis=1)                        # [B, D]
    ref = jnp.dot(pooled_ref.astype(jnp.bfloat16), weight.T.astype(jnp.bfloat16),
                  preferred_element_type=jnp.float32) + bias               # [B, O]

    assert out_auto.shape == (B, O)
    assert out_one.shape == (B, O)
    assert out_odd.shape == (11, O)
    assert jnp.allclose(out_auto, ref, atol=5e-4, rtol=2e-3), \
        float(jnp.max(jnp.abs(out_auto - ref)))
    assert jnp.allclose(out_one, ref, atol=5e-4, rtol=2e-3), \
        float(jnp.max(jnp.abs(out_one - ref)))
    assert jnp.allclose(out_odd, ref[:11], atol=5e-4, rtol=2e-3), \
        float(jnp.max(jnp.abs(out_odd - ref[:11])))
    assert jnp.allclose(out_auto, out_one, atol=1e-5, rtol=1e-5)
    assert jnp.allclose(out_auto[:11], out_odd, atol=1e-5, rtol=1e-5)

    print("KERNEL_OK")
</pallas_src>

<mosaic_0001>
module attributes {stable_mosaic.version = 11 : i64} {
  func.func @_finetune_llm_kernel(%arg0: i32, %arg1: memref<256xi32, #tpu.memory_space<smem>>, %arg2: memref<1xi32, #tpu.memory_space<smem>>, %arg3: memref<1000x384xi32, #tpu.memory_space<any>>, %arg4: memref<768x128xbf16, #tpu.memory_space<vmem>>, %arg5: memref<1x128xf32, #tpu.memory_space<vmem>>, %arg6: memref<8x128xf32, #tpu.memory_space<vmem>>, %arg7: memref<64x384xi32, #tpu.memory_space<vmem>>, %arg8: memref<8x768xf32, #tpu.memory_space<vmem>>, %arg9: memref<64x!tpu.dma_semaphore, #tpu.memory_space<semaphore_mem>>) attributes {dimension_semantics = [#tpu.dimension_semantics<parallel>], iteration_bounds = array<i64: 2>, scalar_prefetch = 2 : i64, scratch_operands = 3 : i64, tpu.core_type = #tpu.core_type<tc>, window_params = [{}, {pipeline_mode = #tpu.pipeline_mode<synchronous>, transform_indices = @transform_1, window_bounds = array<i64: 768, 128>}, {pipeline_mode = #tpu.pipeline_mode<synchronous>, transform_indices = @transform_2, window_bounds = array<i64: 1, 128>}, {transform_indices = @transform_3, window_bounds = array<i64: 8, 128>}]} {
    %c8_i32 = arith.constant 8 : i32
    %0 = arith.muli %arg0, %c8_i32 : i32
    %c16_i32 = arith.constant 16 : i32
    %1 = arith.muli %0, %c16_i32 : i32
    %c0 = arith.constant 0 : index
    %2 = memref.load %arg2[%c0] : memref<1xi32, #tpu.memory_space<smem>>
    %3 = arith.subi %2, %0 : i32
    %c0_i32 = arith.constant 0 : i32
    %4 = arith.maxsi %3, %c0_i32 : i32
    %c8_i32_0 = arith.constant 8 : i32
    %5 = arith.minsi %4, %c8_i32_0 : i32
    %c4_i32 = arith.constant 4 : i32
    %6 = arith.minsi %c4_i32, %5 : i32
    %c0_i32_1 = arith.constant 0 : i32
    %c0_i32_2 = arith.constant 0 : i32
    %7 = arith.subi %6, %c0_i32_2 : i32
    %8 = arith.addi %c0_i32_2, %7 : i32
    %c1_i32 = arith.constant 1 : i32
    scf.for %arg10 = %c0_i32_2 to %8 step %c1_i32  : i32 {
      %c0_i32_16 = arith.constant 0 : i32
      %c0_i32_17 = arith.constant 0 : i32
      %c16_i32_18 = arith.constant 16 : i32
      %22 = arith.addi %c0_i32_17, %c16_i32_18 : i32
      %c1_i32_19 = arith.constant 1 : i32
      scf.for %arg11 = %c0_i32_17 to %22 step %c1_i32_19  : i32 {
        %c16_i32_21 = arith.constant 16 : i32
        %23 = arith.muli %arg10, %c16_i32_21 : i32
        %24 = arith.addi %1, %23 : i32
        %25 = arith.addi %24, %arg11 : i32
        %c16_i32_22 = arith.constant 16 : i32
        %26 = arith.muli %arg10, %c16_i32_22 : i32
        %27 = arith.addi %26, %arg11 : i32
        %28 = arith.index_cast %25 : i32 to index
        %29 = memref.load %arg1[%28] : memref<256xi32, #tpu.memory_space<smem>>
        %c0_i32_23 = arith.constant 0 : i32
        %30 = tpu.memref_slice %arg3[%29, %c0_i32_23] : memref<1000x384xi32, #tpu.memory_space<any>> -> memref<1x384xi32, #tpu.memory_space<any>>
        %c0_i32_24 = arith.constant 0 : i32
        %31 = tpu.memref_slice %arg7[%27, %c0_i32_24] : memref<64x384xi32, #tpu.memory_space<vmem>> -> memref<1x384xi32, #tpu.memory_space<vmem>>
        %32 = tpu.memref_slice %arg9[%27] : memref<64x!tpu.dma_semaphore, #tpu.memory_space<semaphore_mem>> -> memref<1x!tpu.dma_semaphore, #tpu.memory_space<semaphore_mem>>
        %33 = tpu.memref_squeeze %32 : memref<1x!tpu.dma_semaphore, #tpu.memory_space<semaphore_mem>> -> memref<!tpu.dma_semaphore, #tpu.memory_space<semaphore_mem>>
        tpu.enqueue_dma source(%30 : memref<1x384xi32, #tpu.memory_space<any>>) target(%31 : memref<1x384xi32, #tpu.memory_space<vmem>>) target_semaphore(%33 : memref<!tpu.dma_semaphore, #tpu.memory_space<semaphore_mem>>)
      }
      %c16_i32_20 = arith.constant 16 : i32
    }
    %c8_i32_3 = arith.constant 8 : i32
    %9 = arith.cmpi slt, %5, %c8_i32_3 : i32
    %10 = arith.extui %9 : i1 to i32
    %c0_i32_4 = arith.constant 0 : i32
    %11 = arith.cmpi ne, %10, %c0_i32_4 : i32
    scf.if %11 {
      %cst_16 = arith.constant 0.000000e+00 : f32
      %22 = vector.broadcast %cst_16 : f32 to vector<8x768xf32>
      %c0_17 = arith.constant 0 : index
      %c0_18 = arith.constant 0 : index
      %23 = vector.load %arg8[%c0_17, %c0_18] : memref<8x768xf32, #tpu.memory_space<vmem>>, vector<8x768xf32>
      tpu.vector_store %arg8[%c0_17, %c0_18], %22 {strides = array<i32>} : memref<8x768xf32, #tpu.memory_space<vmem>>, vector<8x768xf32>,
    } else {
    }
    %c0_i32_5 = arith.constant 0 : i32
    %c-65536_i32 = arith.constant -65536 : i32
    %c0_i32_6 = arith.constant 0 : i32
    %12 = arith.subi %5, %c0_i32_6 : i32
    %13 = arith.addi %c0_i32_6, %12 : i32
    %c1_i32_7 = arith.constant 1 : i32
    scf.for %arg10 = %c0_i32_6 to %13 step %c1_i32_7  : i32 {
      %c3_i32 = arith.constant 3 : i32
      %22 = arith.andi %arg10, %c3_i32 : i32
      %c16_i32_16 = arith.constant 16 : i32
      %23 = arith.muli %22, %c16_i32_16 : i32
      %c4_i32_17 = arith.constant 4 : i32
      %24 = arith.addi %arg10, %c4_i32_17 : i32
      %25 = arith.cmpi slt, %24, %5 : i32
      %c16_i32_18 = arith.constant 16 : i32
      %26 = arith.muli %24, %c16_i32_18 : i32
      %27 = arith.addi %1, %26 : i32
      %28 = arith.select %25, %27, %1 : i32
      %cst_19 = arith.constant 0.000000e+00 : f32
      %29 = vector.broadcast %cst_19 : f32 to vector<1x384xf32>
      %c0_i32_20 = arith.constant 0 : i32
      %c16_i32_21 = arith.constant 16 : i32
      %30 = arith.addi %c0_i32_20, %c16_i32_21 : i32
      %c1_i32_22 = arith.constant 1 : i32
      %31:2 = scf.for %arg11 = %c0_i32_20 to %30 step %c1_i32_22 iter_args(%arg12 = %29, %arg13 = %29) -> (vector<1x384xf32>, vector<1x384xf32>)  : i32 {
        %40 = arith.addi %23, %arg11 : i32
        %41 = arith.addi %28, %arg11 : i32
        %42 = arith.index_cast %41 : i32 to index
        %43 = memref.load %arg1[%42] : memref<256xi32, #tpu.memory_space<smem>>
        %c0_i32_27 = arith.constant 0 : i32
        %c0_i32_28 = arith.constant 0 : i32
        %44 = tpu.memref_slice %arg3[%c0_i32_27, %c0_i32_28] : memref<1000x384xi32, #tpu.memory_space<any>> -> memref<1x384xi32, #tpu.memory_space<any>>
        %c0_i32_29 = arith.constant 0 : i32
        %45 = tpu.memref_slice %arg7[%40, %c0_i32_29] : memref<64x384xi32, #tpu.memory_space<vmem>> -> memref<1x384xi32, #tpu.memory_space<vmem>>
        %46 = tpu.memref_slice %arg9[%40] : memref<64x!tpu.dma_semaphore, #tpu.memory_space<semaphore_mem>> -> memref<1x!tpu.dma_semaphore, #tpu.memory_space<semaphore_mem>>
        %47 = tpu.memref_squeeze %46 : memref<1x!tpu.dma_semaphore, #tpu.memory_space<semaphore_mem>> -> memref<!tpu.dma_semaphore, #tpu.memory_space<semaphore_mem>>
        tpu.wait_dma2 semaphore(%47 : memref<!tpu.dma_semaphore, #tpu.memory_space<semaphore_mem>>) src(%44 : memref<1x384xi32, #tpu.memory_space<any>>) dst(%45 : memref<1x384xi32, #tpu.memory_space<vmem>>)
        %48 = arith.index_cast %40 : i32 to index
        %c0_30 = arith.constant 0 : index
        %49 = vector.load %arg7[%48, %c0_30] : memref<64x384xi32, #tpu.memory_space<vmem>>, vector<1x384xi32>
        %c16_i32_31 = arith.constant 16 : i32
        %50 = vector.broadcast %c16_i32_31 : i32 to vector<1x384xi32>
        %51 = arith.shli %49, %50 : vector<1x384xi32>
        %52 = tpu.bitcast %51 : vector<1x384xi32> -> vector<1x384xf32>
        %53 = vector.broadcast %c-65536_i32 : i32 to vector<1x384xi32>
        %54 = arith.andi %49, %53 : vector<1x384xi32>
        %55 = tpu.bitcast %54 : vector<1x384xi32> -> vector<1x384xf32>
        %56 = arith.addf %arg12, %52 : vector<1x384xf32>
        %57 = arith.addf %arg13, %55 : vector<1x384xf32>
        %58 = arith.extui %25 : i1 to i32
        %c0_i32_32 = arith.constant 0 : i32
        %59 = arith.cmpi ne, %58, %c0_i32_32 : i32
        scf.if %59 {
          %c0_i32_33 = arith.constant 0 : i32
          %60 = tpu.memref_slice %arg3[%43, %c0_i32_33] : memref<1000x384xi32, #tpu.memory_space<any>> -> memref<1x384xi32, #tpu.memory_space<any>>
          %c0_i32_34 = arith.constant 0 : i32
          %61 = tpu.memref_slice %arg7[%40, %c0_i32_34] : memref<64x384xi32, #tpu.memory_space<vmem>> -> memref<1x384xi32, #tpu.memory_space<vmem>>
          %62 = tpu.memref_slice %arg9[%40] : memref<64x!tpu.dma_semaphore, #tpu.memory_space<semaphore_mem>> -> memref<1x!tpu.dma_semaphore, #tpu.memory_space<semaphore_mem>>
          %63 = tpu.memref_squeeze %62 : memref<1x!tpu.dma_semaphore, #tpu.memory_space<semaphore_mem>> -> memref<!tpu.dma_semaphore, #tpu.memory_space<semaphore_mem>>
          tpu.enqueue_dma source(%60 : memref<1x384xi32, #tpu.memory_space<any>>) target(%61 : memref<1x384xi32, #tpu.memory_space<vmem>>) target_semaphore(%63 : memref<!tpu.dma_semaphore, #tpu.memory_space<semaphore_mem>>)
        } else {
        }
        scf.yield %56, %57 : vector<1x384xf32>, vector<1x384xf32>
      }
      %c16_i32_23 = arith.constant 16 : i32
      %cst_24 = arith.constant 6.250000e-02 : f32
      %32 = vector.broadcast %cst_24 : f32 to vector<1x384xf32>
      %33 = arith.mulf %31#0, %32 : vector<1x384xf32>
      %34 = arith.index_cast %arg10 : i32 to index
      %c0_25 = arith.constant 0 : index
      %35 = vector.load %arg8[%34, %c0_25] : memref<8x768xf32, #tpu.memory_space<vmem>>, vector<1x384xf32>
      tpu.vector_store %arg8[%34, %c0_25], %33 {strides = array<i32>} : memref<8x768xf32, #tpu.memory_space<vmem>>, vector<1x384xf32>,
      %cst_26 = arith.constant 6.250000e-02 : f32
      %36 = vector.broadcast %cst_26 : f32 to vector<1x384xf32>
      %37 = arith.mulf %31#1, %36 : vector<1x384xf32>
      %38 = arith.index_cast %arg10 : i32 to index
      %c384 = arith.constant 384 : index
      %39 = vector.load %arg8[%38, %c384] : memref<8x768xf32, #tpu.memory_space<vmem>>, vector<1x384xf32>
      tpu.vector_store %arg8[%38, %c384], %37 {strides = array<i32>} : memref<8x768xf32, #tpu.memory_space<vmem>>, vector<1x384xf32>,
    }
    %c0_8 = arith.constant 0 : index
    %c0_9 = arith.constant 0 : index
    %14 = vector.load %arg8[%c0_8, %c0_9] : memref<8x768xf32, #tpu.memory_space<vmem>>, vector<8x768xf32>
    %15 = arith.truncf %14 : vector<8x768xf32> to vector<8x768xbf16>
    %c0_10 = arith.constant 0 : index
    %c0_11 = arith.constant 0 : index
    %16 = vector.load %arg4[%c0_10, %c0_11] : memref<768x128xbf16, #tpu.memory_space<vmem>>, vector<768x128xbf16>
    %cst = arith.constant dense<0.000000e+00> : vector<8x128xf32>
    %17 = tpu.matmul %15, %16, %cst {dimension_numbers = #tpu.dot_dimension_numbers<[1], [0], [0], [1], [0, 0, 1, 1], [], []>} : vector<8x768xbf16>, vector<768x128xbf16>, vector<8x128xf32> -> vector<8x128xf32>
    %c0_12 = arith.constant 0 : index
    %c0_13 = arith.constant 0 : index
    %18 = vector.load %arg5[%c0_12, %c0_13] : memref<1x128xf32, #tpu.memory_space<vmem>>, vector<1x128xf32>
    %19 = vector.broadcast %18 : vector<1x128xf32> to vector<8x128xf32>
    %20 = arith.addf %17, %19 : vector<8x128xf32>
    %c0_14 = arith.constant 0 : index
    %c0_15 = arith.constant 0 : index
    %21 = vector.load %arg6[%c0_14, %c0_15] : memref<8x128xf32, #tpu.memory_space<vmem>>, vector<8x128xf32>
    tpu.vector_store %arg6[%c0_14, %c0_15], %20 {strides = array<i32>} : memref<8x128xf32, #tpu.memory_space<vmem>>, vector<8x128xf32>,
    return
  }
  func.func @transform_1(%arg0: i32, %arg1: memref<256xi32, #tpu.memory_space<smem>>, %arg2: memref<1xi32, #tpu.memory_space<smem>>) -> (i32, i32) {
    %c0_i32 = arith.constant 0 : i32
    %c0_i32_0 = arith.constant 0 : i32
    %c0_i32_1 = arith.constant 0 : i32
    return %c0_i32, %c0_i32_0 : i32, i32
  }
  func.func @transform_2(%arg0: i32, %arg1: memref<256xi32, #tpu.memory_space<smem>>, %arg2: memref<1xi32, #tpu.memory_space<smem>>) -> (i32, i32) {
    %c0_i32 = arith.constant 0 : i32
    %c0_i32_0 = arith.constant 0 : i32
    %c0_i32_1 = arith.constant 0 : i32
    return %c0_i32, %c0_i32_0 : i32, i32
  }
  func.func @transform_3(%arg0: i32, %arg1: memref<256xi32, #tpu.memory_space<smem>>, %arg2: memref<1xi32, #tpu.memory_space<smem>>) -> (i32, i32) {
    %c0_i32 = arith.constant 0 : i32
    %c0_i32_0 = arith.constant 0 : i32
    return %arg0, %c0_i32 : i32, i32
  }
}

</mosaic_0001>

<llo_original>
// kernel: tpu_custom_call.1
$region0: #{tpu_custom_call.1}
  #allocation0 [shape = 'u32[]', space=smem, size = 0x4, offset = 0x4, fixed_abs, tag = 'smem constant byte address 0x4 - core index']
  #allocation1 [shape = 'u32[144,128]{1,0:T(1,128)}', space=vmem, size = 0x12000, scoped, tag = 'internal scratch']
  #allocation2 [shape = 's32[64,384]{1,0:T(8,128)}', space=vmem, size = 0x18000, scoped, tag = 'scratch operand']
  #allocation3 [shape = 'f32[8,768]{1,0:T(8,128)}', space=vmem, size = 0x6000, scoped, tag = 'scratch operand']
  #allocation4 [shape = 's32[64]{0}', space=sflag, size = 0x100, scoped, tag = 'scratch operand']
  #allocation5 [shape = 's32[1]{0}', space=sflag, size = 0x4, scoped, tag = 'scoped memory for tpu_custom_call.1']
  #allocation6 [shape = 'u8[1024]{0}', space=smem, size = 0x400, scoped, tag = 'prefetched SMEM operand 0']
  #allocation7 [shape = 's32[1]{0:T(128)S(6)}', space=smem, size = 0x200, scoped, tag = 'prefetched SMEM operand 1']
  #allocation14 [shape = 's32[]', space=sflag, size = 0x4, offset = 0, fixed_abs, tag = 'sflag constant byte address 0x0 - dummy sync flag']
  #allocation15 [shape = 's32[]', space=sflag, size = 0x4, offset = 0, fixed_abs, tag = 'sflag constant byte address 0x0 - dummy sync flag']
  %s0 = inlined_call_operand.hbm [shape: s32[256], index: 0, kind: input, shape index: {}]
  %s1 = inlined_call_operand.<no memory space> [shape: s32[1], index: 1, kind: input, shape index: {}]
  %s2 = inlined_call_operand.hbm [shape: u32[1000,384], index: 2, kind: input, shape index: {}]
  %s3 = inlined_call_operand.hbm [shape: bf16[768,128], index: 3, kind: input, shape index: {}]
  %s4 = inlined_call_operand.hbm [shape: f32[1,128], index: 4, kind: input, shape index: {}]
  %s5 = inlined_call_operand.hbm [shape: f32[16,128], index: 5, kind: output, shape index: {}]
  %s6 = sld [smem:[#allocation0]]
  $region85: #{tpu_custom_call.1} parent=0
    _
  %s8 = ssub.s32 1, %s6
  %s9 = scalar_select 0, %s8, %s6
  %11 = dma.hbm_to_smem %s0, 32, [#allocation6], [#allocation5]
  %12 = sst [smem:[#allocation7]] %s1
  %13 = dma.done [#allocation5], 32
  %14 = sfence
  $region1: #{tpu_custom_call.1} parent=0
    #allocation8 [shape = 'u8[196608]{0}', space=vmem, size = 0x30000, scoped, tag = 'input window, operand 3, single buffered']
    #allocation9 [shape = 's32[2]{0}', space=sflag, size = 0x8, scoped, tag = 'scoped memory for tpu_custom_call.1']
    #allocation10 [shape = 's32[2]{0}', space=sflag, size = 0x8, scoped, tag = 'scoped memory for tpu_custom_call.1']
    #allocation11 [shape = 'u8[512]{0}', space=vmem, size = 0x400, scoped, tag = 'input window, operand 4, single buffered']
    #allocation12 [shape = 's32[1]{0}', space=sflag, size = 0x4, scoped, tag = 'scoped memory for tpu_custom_call.1']
    #allocation13 [shape = 'u8[8192]{0}', space=vmem, size = 0x2000, scoped, tag = 'output window, operand 0']
    %15 = vsyncpa [#allocation9], 0
    %16 = vsyncpa [#allocation12], 0
    %17 = vsyncpa [#allocation10], 0
    %s18 = scalar_lea.sflag [#allocation10], 1
    %19 = vsyncpa %s18, 0
    loop: start=0, step=1, limit=4
    $region2: #{tpu_custom_call.1} parent=1 // loop_pre_header
      _
    $region3: #{tpu_custom_call.1} parent=1 // loop_header
      %s21 = sphi 0, %s25
      %p22 = scmp.ge.s32.totalorder %s21, 4
      %s29 = sphi 0, %s29
      %s31 = sphi 0, %s29
      %s32 = sphi 0, %s31
      %s46 = sphi 0, %s32
      %s50 = sphi 0, %s50
      %s52 = sphi 0, %s50
      %s53 = sphi 0, %s52
      %s67 = sphi 0, %s53
      %s73 = sphi 0, %s75
      %s76 = sphi 0, %s73
      %s77 = sphi 0, %s76
      %s93 = sphi 0, %s77
    $region4: #{tpu_custom_call.1} parent=1 // loop_header_branch
      %24 = sbr.rel (%p22) target = $region8
    $region5: #{tpu_custom_call.1} parent=1 // loop_body
      %s26 = ssub.s32 %s21, 1
      %s27 = ssub.s32 %s21, 2
      %s28 = sadd.s32 %s21, 1
      %s30 = sadd.s32 %s29, 1
      %p33 = scmp.eq.s32.totalorder %s21, 1
      %p34 = scmp.ne.s32.totalorder %s29, %s31
      %p35 = scmp.eq.s32.totalorder %s21, 0
      %p36 = por %p34, %p35
      %p37 = scmp.ne.s32.totalorder %s29, %s31
      %p38 = scmp.eq.s32.totalorder %s26, 1
      %p39 = por %p37, %p38
      %p40 = scmp.ne.s32.totalorder %s31, %s32
      %p41 = scmp.eq.s32.totalorder %s26, 0
      %p42 = por %p40, %p41
      %p43 = scmp.ne.s32.totalorder %s31, %s32
      %p44 = scmp.eq.s32.totalorder %s27, 1
      %p45 = por %p43, %p44
      %p47 = scmp.ne.s32.totalorder %s32, %s46
      %p48 = scmp.eq.s32.totalorder %s27, 0
      %p49 = por %p47, %p48
      %s51 = sadd.s32 %s50, 1
      %p54 = scmp.eq.s32.totalorder %s21, 1
      %p55 = scmp.ne.s32.totalorder %s50, %s52
      %p56 = scmp.eq.s32.totalorder %s21, 0
      %p57 = por %p55, %p56
      %p58 = scmp.ne.s32.totalorder %s50, %s52
      %p59 = scmp.eq.s32.totalorder %s26, 1
      %p60 = por %p58, %p59
      %p61 = scmp.ne.s32.totalorder %s52, %s53
      %p62 = scmp.eq.s32.totalorder %s26, 0
      %p63 = por %p61, %p62
      %p64 = scmp.ne.s32.totalorder %s52, %s53
      %p65 = scmp.eq.s32.totalorder %s27, 1
      %p66 = por %p64, %p65
      %p68 = scmp.ne.s32.totalorder %s53, %s67
      %p69 = scmp.eq.s32.totalorder %s27, 0
      %p70 = por %p68, %p69
      %s71 = ssub.s32 %s21, %s28
      %p72 = scmp.eq.s32.totalorder %s71, 0
      %s74 = sadd.s32 %s73, 1
      %s75 = scalar_select %p72, %s73, %s74
      %p78 = pneg %p72
      %p79 = scmp.eq.s32.totalorder %s21, 1
      %p80 = por %p78, %p79
      %p81 = scmp.ne.s32.totalorder %s73, %s76
      %p82 = scmp.eq.s32.totalorder %s21, 0
      %p83 = por %p81, %p82
      %p84 = scmp.ne.s32.totalorder %s73, %s76
      %p85 = scmp.eq.s32.totalorder %s26, 1
      %p86 = por %p84, %p85
      %p87 = scmp.ne.s32.totalorder %s76, %s77
      %p88 = scmp.eq.s32.totalorder %s26, 0
      %p89 = por %p87, %p88
      %p90 = scmp.ne.s32.totalorder %s76, %s77
      %p91 = scmp.eq.s32.totalorder %s27, 1
      %p92 = por %p90, %p91
      %p94 = scmp.ne.s32.totalorder %s77, %s93
      %p95 = scmp.eq.s32.totalorder %s27, 0
      %p96 = por %p94, %p95
      %p97 = scmp.le.s32.totalorder 1, %s21
      %p98 = scmp.lt.s32.totalorder %s21, 3
      %p99 = pnand %p97, %p98
      %p100 = pneg %p99
      // Predicated region
      $region9: #{tpu_custom_call.1} parent=5 // pred_check
        _
      $region10: #{tpu_custom_call.1} parent=5 // pred_check_branch
        %102 = sbr.rel (%p99) target = $region12
      $region11: #{tpu_custom_call.1} parent=5 // pred_region
        %s103 = ssub.s32 %s21, 1
        // Predicated region
        $region13: #{tpu_custom_call.1} parent=11 // pred_check
          %p104 = pneg %p42
        $region14: #{tpu_custom_call.1} parent=11 // pred_check_branch
          %106 = sbr.rel (%p104) target = $region16
        $region15: #{tpu_custom_call.1} parent=11 // pred_region
          %s108 = ssub.s32 6144, 6144
          %109 = vsyncadd [#allocation9], %s108
          %s110 = sshll.u32 [#allocation8], 4
          %s111 = int_to_ptr.vmem [resolvable:$true] %s110
          %116 = dma.hbm_to_vmem [thread:$0]  %s3, 6144, %s111, [#allocation9], 64, 64, 4
        $region16: #{tpu_custom_call.1} parent=11 // pred_fallthru
          _
        // Predicated region
        $region17: #{tpu_custom_call.1} parent=11 // pred_check
          %p117 = pneg %p63
        $region18: #{tpu_custom_call.1} parent=11 // pred_check_branch
          %119 = sbr.rel (%p117) target = $region20
        $region19: #{tpu_custom_call.1} parent=11 // pred_region
          %s121 = ssub.s32 16, 16
          %122 = vsyncadd [#allocation12], %s121
          %s124 = sshll.u32 [#allocation11], 4
          %s125 = int_to_ptr.vmem [resolvable:$true] %s124
          %127 = dma.hbm_to_vmem [thread:$0]  %s4, 16, %s125, [#allocation12]
        $region20: #{tpu_custom_call.1} parent=11 // pred_fallthru
          _
      $region12: #{tpu_custom_call.1} parent=5 // pred_fallthru
        _
      %p128 = scmp.lt.s32.totalorder %s21, 2
      // Predicated region
      $region21: #{tpu_custom_call.1} parent=5 // pred_check
        %p129 = pneg %p128
      $region22: #{tpu_custom_call.1} parent=5 // pred_check_branch
        %131 = sbr.rel (%p129) target = $region24
      $region23: #{tpu_custom_call.1} parent=5 // pred_region
        _
      $region24: #{tpu_custom_call.1} parent=5 // pred_fallthru
        _
      %p132 = scmp.le.s32.totalorder 1, %s21
      %p133 = scmp.lt.s32.totalorder %s21, 3
      %p134 = pnand %p132, %p133
      %p135 = pneg %p134
      // Predicated region
      $region25: #{tpu_custom_call.1} parent=5 // pred_check
        _
      $region26: #{tpu_custom_call.1} parent=5 // pred_check_branch
        %137 = sbr.rel (%p134) target = $region28
      $region27: #{tpu_custom_call.1} parent=5 // pred_region
        %s138 = ssub.s32 %s21, 1
        // Predicated region
        $region29: #{tpu_custom_call.1} parent=27 // pred_check
          %p139 = pneg %p42
        $region30: #{tpu_custom_call.1} parent=27 // pred_check_branch
          %141 = sbr.rel (%p139) target = $region32
        $region31: #{tpu_custom_call.1} parent=27 // pred_region
          %142 = dma.done [#allocation9], 6144
        $region32: #{tpu_custom_call.1} parent=27 // pred_fallthru
          _
        // Predicated region
        $region33: #{tpu_custom_call.1} parent=27 // pred_check
          %p143 = pneg %p63
        $region34: #{tpu_custom_call.1} parent=27 // pred_check_branch
          %145 = sbr.rel (%p143) target = $region36
        $region35: #{tpu_custom_call.1} parent=27 // pred_region
          %146 = dma.done [#allocation12], 16
        $region36: #{tpu_custom_call.1} parent=27 // pred_fallthru
          _
        %p147 = pneg %p42
        %p148 = pneg %p39
        %p149 = pneg %p63
        %p150 = pneg %p60
        %p151 = pneg %p89
        %p152 = pneg %p86
        %s153 = sand.u32 %s76, 1
        %s154 = scalar_lea.sflag [#allocation10], %s153
        %s155 = sand.u32 %s76, 1
        %s156 = smul.addr %s155, 8
        %s157 = scalar_lea.vmem [#allocation13], %s156
        %s159 = smul.u32 %s26, 8
        %s160 = smul.u32 %s26, 128
        %s161 = sld [smem:[#allocation7]]
        %s162 = ssub.s32 %s161, %s159
        %p163 = scmp.gt.s32.totalorder %s162, 0
        %s164 = scalar_select %p163, %s162, 0
        %p165 = scmp.lt.s32.totalorder %s164, 8
        %s166 = scalar_select %p165, %s164, 8
        %p167 = scmp.lt.s32.totalorder %s166, 4
        %s168 = scalar_select %p167, %s166, 4
        // While loop
        $region37: #{tpu_custom_call.1} parent=27 // loop_pre_header
          _
        $region38: #{tpu_custom_call.1} parent=27 // loop_header
          %s170 = sphi 0, %s172
          %p171 = scmp.ge.s32.totalorder %s170, %s168
        $region39: #{tpu_custom_call.1} parent=27 // loop_header_branch
          %174 = sbr.rel (%p171) target = $region43
        $region40: #{tpu_custom_call.1} parent=27 // loop_body
          loop: start=0, step=1, limit=16
          $region44: #{tpu_custom_call.1} parent=40 // loop_pre_header
            _
          $region45: #{tpu_custom_call.1} parent=40 // loop_header
            %s176 = sphi 0, %s180
            %p177 = scmp.ge.s32.totalorder %s176, 16
          $region46: #{tpu_custom_call.1} parent=40 // loop_header_branch
            %179 = sbr.rel (%p177) target = $region50
          $region47: #{tpu_custom_call.1} parent=40 // loop_body
            %s181 = smul.u32 %s170, 16
            %s182 = sadd.s32 %s160, %s181
            %s183 = sadd.s32 %s182, %s176
            %s184 = sadd.s32 %s181, %s176
            %s185 = sld [smem:[#allocation6 + %s183]]
            %s186 = sshrl.u32 %s185, 3
            %s187 = sand.u32 %s185, 7
            %s188 = smul.u32 %s186, 24
            %s189 = sadd.s32 %s187, %s188
            %s190 = smul.addr %s189, 16
            %s191 = scalar_lea.hbm %s2, %s190
            %s192 = sshrl.u32 %s184, 3
            %s193 = sand.u32 %s184, 7
            %s194 = smul.u32 %s192, 24
            %s195 = sadd.s32 %s193, %s194
            %s196 = scalar_lea.vmem [#allocation2], %s195
            %s197 = scalar_lea.sflag [#allocation4], %s184
            %s199 = sshll.u32 %s196, 4
            %s200 = int_to_ptr.vmem [resolvable:$true] %s199
            %202 = dma.hbm_to_vmem [thread:$0]  %s191, 48, %s200, %s197, 128, 128, 1
          $region48: #{tpu_custom_call.1} parent=40 // loop_footer
            %s180 = sadd.s32 1, %s176
          $region49: #{tpu_custom_call.1} parent=40 // loop_footer_branch
            %175 = sbr.rel target = $region45
          $region50: #{tpu_custom_call.1} parent=40 // loop_exit
            _
        $region41: #{tpu_custom_call.1} parent=27 // loop_footer
          %s172 = sadd.s32 %s170, 1
        $region42: #{tpu_custom_call.1} parent=27 // loop_footer_branch
          %169 = sbr.rel target = $region38
        $region43: #{tpu_custom_call.1} parent=27 // loop_exit
          _
        %p203 = scmp.lt.s32.totalorder %s166, 8
        // Predicated region
        $region51: #{tpu_custom_call.1} parent=27 // pred_check
          %p204 = pneg %p203
        $region52: #{tpu_custom_call.1} parent=27 // pred_check_branch
          %206 = sbr.rel (%p204) target = $region54
        $region53: #{tpu_custom_call.1} parent=27 // pred_region
          %207 = vst [vmem:[#allocation3] sm:$0xff] 0.0
          %208 = vst [vmem:[#allocation3 + $0x8] sm:$0xff] 0.0
          %209 = vst [vmem:[#allocation3 + $0x10] sm:$0xff] 0.0
          %210 = vst [vmem:[#allocation3 + $0x18] sm:$0xff] 0.0
          %211 = vst [vmem:[#allocation3 + $0x20] sm:$0xff] 0.0
          %212 = vst [vmem:[#allocation3 + $0x28] sm:$0xff] 0.0
        $region54: #{tpu_custom_call.1} parent=27 // pred_fallthru
          _
        // While loop
        $region55: #{tpu_custom_call.1} parent=27 // loop_pre_header
          _
        $region56: #{tpu_custom_call.1} parent=27 // loop_header
          %s214 = sphi 0, %s216
          %p215 = scmp.ge.s32.totalorder %s214, %s166
        $region57: #{tpu_custom_call.1} parent=27 // loop_header_branch
          %218 = sbr.rel (%p215) target = $region61
        $region58: #{tpu_custom_call.1} parent=27 // loop_body
          %s219 = sand.u32 %s214, 3
          %s220 = smul.u32 %s219, 16
          %s221 = sadd.s32 %s214, 4
          %p222 = scmp.lt.s32.totalorder %s221, %s166
          %s223 = smul.u32 %s221, 16
          %s224 = sadd.s32 %s160, %s223
          %s225 = scalar_select %p222, %s224, %s160
          loop: start=0, step=1, limit=16
          $region62: #{tpu_custom_call.1} parent=58 // loop_pre_header
            _
          $region63: #{tpu_custom_call.1} parent=58 // loop_header
            %s227 = sphi 0, %s231
            %p228 = scmp.ge.s32.totalorder %s227, 16
            %v232 = vphi 0.0, %v291
            %v233 = vphi 0.0, %v292
            %v234 = vphi 0.0, %v293
            %v235 = vphi 0.0, %v294
            %v236 = vphi 0.0, %v295
            %v237 = vphi 0.0, %v296
          $region64: #{tpu_custom_call.1} parent=58 // loop_header_branch
            %230 = sbr.rel (%p228) target = $region68
          $region65: #{tpu_custom_call.1} parent=58 // loop_body
            %s238 = sadd.s32 %s220, %s227
            %s239 = sadd.s32 %s225, %s227
            %s240 = sld [smem:[#allocation6 + %s239]]
            %s241 = sshrl.u32 %s238, 3
            %s242 = sand.u32 %s238, 7
            %s243 = smul.u32 %s241, 24
            %s244 = sadd.s32 %s242, %s243
            %s245 = scalar_lea.vmem [#allocation2], %s244
            %s246 = scalar_lea.sflag [#allocation4], %s238
            %s247 = smul.u32 1, 3
            %s248 = sshll.u32 %s247, 4
            %249 = dma.done %s246, %s248
            %s250 = sshra.s32 %s238, 3
            %s251 = sand.u32 %s238, 7
            %s252 = sshra.s32 %s238, 3
            %s253 = sand.u32 %s238, 7
            %s254 = smul.u32 %s250, 3
            %s255 = smul.u32 %s254, 8
            %s256 = sadd.s32 %s255, %s253
            %s257 = scalar_lea.vmem [#allocation2], %s256
            %v258 = vld [vmem:[%s257] ss:$8 sm:$0x7]
            %v259 = vshll.u32 %v258, 16
            %v260 = vlaneseq
            %v261 = vshrl.u32 %v260, 7
            %v262 = vsub.s32 0, %v261
            %v263 = vrot.slane %v259, %v262
            %v264 = vlaneseq
            %v265 = vshrl.u32 %v264, 7
            %v266 = vsub.s32 1, %v265
            %v267 = vrot.slane %v259, %v266
            %v268 = vlaneseq
            %v269 = vshrl.u32 %v268, 7
            %v270 = vsub.s32 2, %v269
            %v271 = vrot.slane %v259, %v270
            %v275 = vand.u32 %v258, 4294901760
            %v276 = vlaneseq
            %v277 = vshrl.u32 %v276, 7
            %v278 = vsub.s32 0, %v277
            %v279 = vrot.slane %v275, %v278
            %v280 = vlaneseq
            %v281 = vshrl.u32 %v280, 7
            %v282 = vsub.s32 1, %v281
            %v283 = vrot.slane %v275, %v282
            %v284 = vlaneseq
            %v285 = vshrl.u32 %v284, 7
            %v286 = vsub.s32 2, %v285
            %v287 = vrot.slane %v275, %v286
            %v291 = vadd.f32 %v232, %v263
            %v292 = vadd.f32 %v233, %v267
            %v293 = vadd.f32 %v234, %v271
            %v294 = vadd.f32 %v235, %v279
            %v295 = vadd.f32 %v236, %v283
            %v296 = vadd.f32 %v237, %v287
            // Predicated region
            $region69: #{tpu_custom_call.1} parent=65 // pred_check
              %p297 = pneg %p222
            $region70: #{tpu_custom_call.1} parent=65 // pred_check_branch
              %299 = sbr.rel (%p297) target = $region72
            $region71: #{tpu_custom_call.1} parent=65 // pred_region
              %s300 = sshrl.u32 %s240, 3
              %s301 = sand.u32 %s240, 7
              %s302 = smul.u32 %s300, 24
              %s303 = sadd.s32 %s301, %s302
              %s304 = smul.addr %s303, 16
              %s305 = scalar_lea.hbm %s2, %s304
              %s307 = sshll.u32 %s245, 4
              %s308 = int_to_ptr.vmem [resolvable:$true] %s307
              %310 = dma.hbm_to_vmem [thread:$0]  %s305, 48, %s308, %s246, 128, 128, 1
            $region72: #{tpu_custom_call.1} parent=65 // pred_fallthru
              _
          $region66: #{tpu_custom_call.1} parent=58 // loop_footer
            %s231 = sadd.s32 1, %s227
          $region67: #{tpu_custom_call.1} parent=58 // loop_footer_branch
            %226 = sbr.rel target = $region63
          $region68: #{tpu_custom_call.1} parent=58 // loop_exit
            _
          %v311 = vmul.f32 %v232, 0.0625
          %v312 = vmul.f32 %v233, 0.0625
          %v313 = vmul.f32 %v234, 0.0625
          %v317 = vcombine.low %v311, %v312
          %v319 = vunpack.c.l.s4 1966171168
          %v320 = vunpack.c.0.s8 %v319
          %v321 = vlaneseq
          %v322 = vshrl.u32 %v321, 7
          %v323 = vsub.s32 %v320, %v322
          %v324 = vrot.slane %v317, %v323
          %v326 = vunpack.c.l.s4 1966171168
          %v327 = vunpack.c.0.s8 %v326
          %v328 = vlaneseq
          %v329 = vshrl.u32 %v328, 7
          %v330 = vsub.s32 %v327, %v329
          %v331 = vrot.slane %v313, %v330
          %v332 = vcombine.low %v324, %v331
          %v334 = vunpack.c.l.s4 1966171168
          %v335 = vunpack.c.0.s8 %v334
          %v336 = vlaneseq
          %v337 = vshrl.u32 %v336, 7
          %v338 = vsub.s32 %v335, %v337
          %v339 = vrot.slane %v332, %v338
          %v341 = vlaneseq
          %vm342 = vcmp.ge.s32.totalorder %v341, 0
          %vm343 = vcmp.lt.s32.totalorder %v341, 384
          %vm344 = vmand %vm342, %vm343
          %s345 = sshra.s32 %s214, 3
          %s346 = sand.u32 %s214, 7
          %s347 = sshra.s32 %s214, 3
          %s348 = sand.u32 %s214, 7
          %s349 = smul.u32 %s345, 6
          %s350 = smul.u32 %s349, 8
          %s351 = sadd.s32 %s350, %s348
          %s352 = scalar_lea.vmem [#allocation3], %s351
          %353 = vst.msk [vmem:[%s352] ss:$8 sm:$0x7] %vm344, %v339
          %354 = vst.msk [vmem:[%s352] ss:$8 sm:$0x0] %vm344, %v339
          %v355 = vmul.f32 %v235, 0.0625
          %v356 = vmul.f32 %v236, 0.0625
          %v357 = vmul.f32 %v237, 0.0625
          %v361 = vcombine.low %v355, %v356
          %v363 = vunpack.c.l.s4 1966171168
          %v364 = vunpack.c.0.s8 %v363
          %v365 = vlaneseq
          %v366 = vshrl.u32 %v365, 7
          %v367 = vsub.s32 %v364, %v366
          %v368 = vrot.slane %v361, %v367
          %v370 = vunpack.c.l.s4 1966171168
          %v371 = vunpack.c.0.s8 %v370
          %v372 = vlaneseq
          %v373 = vshrl.u32 %v372, 7
          %v374 = vsub.s32 %v371, %v373
          %v375 = vrot.slane %v357, %v374
          %v376 = vcombine.low %v368, %v375
          %v378 = vunpack.c.l.s4 1966171168
          %v379 = vunpack.c.0.s8 %v378
          %v380 = vlaneseq
          %v381 = vshrl.u32 %v380, 7
          %v382 = vsub.s32 %v379, %v381
          %v383 = vrot.slane %v376, %v382
          %s385 = sadd.s32 %s349, 3
          %s386 = smul.u32 %s385, 8
          %s387 = sadd.s32 %s386, %s348
          %s388 = scalar_lea.vmem [#allocation3], %s387
          %389 = vst.msk [vmem:[%s388] ss:$8 sm:$0x7] %vm344, %v383
          %390 = vst.msk [vmem:[%s388] ss:$8 sm:$0x0] %vm344, %v383
        $region59: #{tpu_custom_call.1} parent=27 // loop_footer
          %s216 = sadd.s32 %s214, 1
        $region60: #{tpu_custom_call.1} parent=27 // loop_footer_branch
          %213 = sbr.rel target = $region56
        $region61: #{tpu_custom_call.1} parent=27 // loop_exit
          _
        %v391 = vld [vmem:[#allocation3] sm:$0xff]
        %v392 = vld [vmem:[#allocation3 + $0x8] sm:$0xff]
        %v393 = vld [vmem:[#allocation3 + $0x10] sm:$0xff]
        %v394 = vld [vmem:[#allocation3 + $0x18] sm:$0xff]
        %v395 = vld [vmem:[#allocation3 + $0x20] sm:$0xff]
        %v396 = vld [vmem:[#allocation3 + $0x28] sm:$0xff]
        %v397 = vpack.c.bf16 %v391, %v391
        %v398 = vpack.c.bf16 %v392, %v392
        %v399 = vpack.c.bf16 %v393, %v393
        %v400 = vpack.c.bf16 %v394, %v394
        %v401 = vpack.c.bf16 %v395, %v395
        %v402 = vpack.c.bf16 %v396, %v396
        %v403 = vld [vmem:[#allocation8] sm:$0xf]
        %v404 = vld [vmem:[#allocation8 + $0x4] sm:$0xf]
        %v405 = vld [vmem:[#allocation8 + $0x8] sm:$0xf]
        %v406 = vld [vmem:[#allocation8 + $0xc] sm:$0xf]
        %v407 = vld [vmem:[#allocation8 + $0x10] sm:$0xf]
        %v408 = vld [vmem:[#allocation8 + $0x14] sm:$0xf]
        %v409 = vld [vmem:[#allocation8 + $0x18] sm:$0xf]
        %v410 = vld [vmem:[#allocation8 + $0x1c] sm:$0xf]
        %v411 = vld [vmem:[#allocation8 + $0x20] sm:$0xf]
        %v412 = vld [vmem:[#allocation8 + $0x24] sm:$0xf]
        %v413 = vld [vmem:[#allocation8 + $0x28] sm:$0xf]
        %v414 = vld [vmem:[#allocation8 + $0x2c] sm:$0xf]
        %v415 = vld [vmem:[#allocation8 + $0x30] sm:$0xf]
        %v416 = vld [vmem:[#allocation8 + $0x34] sm:$0xf]
        %v417 = vld [vmem:[#allocation8 + $0x38] sm:$0xf]
        %v418 = vld [vmem:[#allocation8 + $0x3c] sm:$0xf]
        %v419 = vld [vmem:[#allocation8 + $0x40] sm:$0xf]
        %v420 = vld [vmem:[#allocation8 + $0x44] sm:$0xf]
        %v421 = vld [vmem:[#allocation8 + $0x48] sm:$0xf]
        %v422 = vld [vmem:[#allocation8 + $0x4c] sm:$0xf]
        %v423 = vld [vmem:[#allocation8 + $0x50] sm:$0xf]
        %v424 = vld [vmem:[#allocation8 + $0x54] sm:$0xf]
        %v425 = vld [vmem:[#allocation8 + $0x58] sm:$0xf]
        %v426 = vld [vmem:[#allocation8 + $0x5c] sm:$0xf]
        %v427 = vld [vmem:[#allocation8 + $0x60] sm:$0xf]
        %v428 = vld [vmem:[#allocation8 + $0x64] sm:$0xf]
        %v429 = vld [vmem:[#allocation8 + $0x68] sm:$0xf]
        %v430 = vld [vmem:[#allocation8 + $0x6c] sm:$0xf]
        %v431 = vld [vmem:[#allocation8 + $0x70] sm:$0xf]
        %v432 = vld [vmem:[#allocation8 + $0x74] sm:$0xf]
        %v433 = vld [vmem:[#allocation8 + $0x78] sm:$0xf]
        %v434 = vld [vmem:[#allocation8 + $0x7c] sm:$0xf]
        %v435 = vld [vmem:[#allocation8 + $0x80] sm:$0xf]
        %v436 = vld [vmem:[#allocation8 + $0x84] sm:$0xf]
        %v437 = vld [vmem:[#allocation8 + $0x88] sm:$0xf]
        %v438 = vld [vmem:[#allocation8 + $0x8c] sm:$0xf]
        %v439 = vld [vmem:[#allocation8 + $0x90] sm:$0xf]
        %v440 = vld [vmem:[#allocation8 + $0x94] sm:$0xf]
        %v441 = vld [vmem:[#allocation8 + $0x98] sm:$0xf]
        %v442 = vld [vmem:[#allocation8 + $0x9c] sm:$0xf]
        %v443 = vld [vmem:[#allocation8 + $0xa0] sm:$0xf]
        %v444 = vld [vmem:[#allocation8 + $0xa4] sm:$0xf]
        %v445 = vld [vmem:[#allocation8 + $0xa8] sm:$0xf]
        %v446 = vld [vmem:[#allocation8 + $0xac] sm:$0xf]
        %v447 = vld [vmem:[#allocation8 + $0xb0] sm:$0xf]
        %v448 = vld [vmem:[#allocation8 + $0xb4] sm:$0xf]
        %v449 = vld [vmem:[#allocation8 + $0xb8] sm:$0xf]
        %v450 = vld [vmem:[#allocation8 + $0xbc] sm:$0xf]
        %v451 = vld [vmem:[#allocation8 + $0xc0] sm:$0xf]
        %v452 = vld [vmem:[#allocation8 + $0xc4] sm:$0xf]
        %v453 = vld [vmem:[#allocation8 + $0xc8] sm:$0xf]
        %v454 = vld [vmem:[#allocation8 + $0xcc] sm:$0xf]
        %v455 = vld [vmem:[#allocation8 + $0xd0] sm:$0xf]
        %v456 = vld [vmem:[#allocation8 + $0xd4] sm:$0xf]
        %v457 = vld [vmem:[#allocation8 + $0xd8] sm:$0xf]
        %v458 = vld [vmem:[#allocation8 + $0xdc] sm:$0xf]
        %v459 = vld [vmem:[#allocation8 + $0xe0] sm:$0xf]
        %v460 = vld [vmem:[#allocation8 + $0xe4] sm:$0xf]
        %v461 = vld [vmem:[#allocation8 + $0xe8] sm:$0xf]
        %v462 = vld [vmem:[#allocation8 + $0xec] sm:$0xf]
        %v463 = vld [vmem:[#allocation8 + $0xf0] sm:$0xf]
        %v464 = vld [vmem:[#allocation8 + $0xf4] sm:$0xf]
        %v465 = vld [vmem:[#allocation8 + $0xf8] sm:$0xf]
        %v466 = vld [vmem:[#allocation8 + $0xfc] sm:$0xf]
        %v467 = vld [vmem:[#allocation8 + $0x100] sm:$0xf]
        %v468 = vld [vmem:[#allocation8 + $0x104] sm:$0xf]
        %v469 = vld [vmem:[#allocation8 + $0x108] sm:$0xf]
        %v470 = vld [vmem:[#allocation8 + $0x10c] sm:$0xf]
        %v471 = vld [vmem:[#allocation8 + $0x110] sm:$0xf]
        %v472 = vld [vmem:[#allocation8 + $0x114] sm:$0xf]
        %v473 = vld [vmem:[#allocation8 + $0x118] sm:$0xf]
        %v474 = vld [vmem:[#allocation8 + $0x11c] sm:$0xf]
        %v475 = vld [vmem:[#allocation8 + $0x120] sm:$0xf]
        %v476 = vld [vmem:[#allocation8 + $0x124] sm:$0xf]
        %v477 = vld [vmem:[#allocation8 + $0x128] sm:$0xf]
        %v478 = vld [vmem:[#allocation8 + $0x12c] sm:$0xf]
        %v479 = vld [vmem:[#allocation8 + $0x130] sm:$0xf]
        %v480 = vld [vmem:[#allocation8 + $0x134] sm:$0xf]
        %v481 = vld [vmem:[#allocation8 + $0x138] sm:$0xf]
        %v482 = vld [vmem:[#allocation8 + $0x13c] sm:$0xf]
        %v483 = vld [vmem:[#allocation8 + $0x140] sm:$0xf]
        %v484 = vld [vmem:[#allocation8 + $0x144] sm:$0xf]
        %v485 = vld [vmem:[#allocation8 + $0x148] sm:$0xf]
        %v486 = vld [vmem:[#allocation8 + $0x14c] sm:$0xf]
        %v487 = vld [vmem:[#allocation8 + $0x150] sm:$0xf]
        %v488 = vld [vmem:[#allocation8 + $0x154] sm:$0xf]
        %v489 = vld [vmem:[#allocation8 + $0x158] sm:$0xf]
        %v490 = vld [vmem:[#allocation8 + $0x15c] sm:$0xf]
        %v491 = vld [vmem:[#allocation8 + $0x160] sm:$0xf]
        %v492 = vld [vmem:[#allocation8 + $0x164] sm:$0xf]
        %v493 = vld [vmem:[#allocation8 + $0x168] sm:$0xf]
        %v494 = vld [vmem:[#allocation8 + $0x16c] sm:$0xf]
        %v495 = vld [vmem:[#allocation8 + $0x170] sm:$0xf]
        %v496 = vld [vmem:[#allocation8 + $0x174] sm:$0xf]
        %v497 = vld [vmem:[#allocation8 + $0x178] sm:$0xf]
        %v498 = vld [vmem:[#allocation8 + $0x17c] sm:$0xf]
        %v499 = vld [vmem:[#allocation11] sm:$0x1]
        %v501 = vlaneseq
        %v502 = vshrl.u32 %v501, 7
        %v503 = vsub.s32 0, %v502
        %v504 = vrot.slane %v499, %v503
        %v602 = vunpack.c.l.b16 %v403
        %v603 = vunpack.c.l.b16 %v404
        %v604 = vunpack.c.l.b16 %v405
        %v605 = vunpack.c.l.b16 %v406
        %v606 = vunpack.c.l.b16 %v407
        %v607 = vunpack.c.l.b16 %v408
        %v608 = vunpack.c.l.b16 %v409
        %v609 = vunpack.c.l.b16 %v410
        %v610 = vunpack.c.l.b16 %v411
        %v611 = vunpack.c.l.b16 %v412
        %v612 = vunpack.c.l.b16 %v413
        %v613 = vunpack.c.l.b16 %v414
        %v614 = vunpack.c.l.b16 %v415
        %v615 = vunpack.c.l.b16 %v416
        %v616 = vunpack.c.l.b16 %v417
        %v617 = vunpack.c.l.b16 %v418
        %v618 = vunpack.c.l.b16 %v419
        %v619 = vunpack.c.l.b16 %v420
        %v620 = vunpack.c.l.b16 %v421
        %v621 = vunpack.c.l.b16 %v422
        %v622 = vunpack.c.l.b16 %v423
        %v623 = vunpack.c.l.b16 %v424
        %v624 = vunpack.c.l.b16 %v425
        %v625 = vunpack.c.l.b16 %v426
        %v626 = vunpack.c.l.b16 %v427
        %v627 = vunpack.c.l.b16 %v428
        %v628 = vunpack.c.l.b16 %v429
        %v629 = vunpack.c.l.b16 %v430
        %v630 = vunpack.c.l.b16 %v431
        %v631 = vunpack.c.l.b16 %v432
        %v632 = vunpack.c.l.b16 %v433
        %v633 = vunpack.c.l.b16 %v434
        %v634 = vunpack.c.l.b16 %v435
        %v635 = vunpack.c.l.b16 %v436
        %v636 = vunpack.c.l.b16 %v437
        %v637 = vunpack.c.l.b16 %v438
        %v638 = vunpack.c.l.b16 %v439
        %v639 = vunpack.c.l.b16 %v440
        %v640 = vunpack.c.l.b16 %v441
        %v641 = vunpack.c.l.b16 %v442
        %v642 = vunpack.c.l.b16 %v443
        %v643 = vunpack.c.l.b16 %v444
        %v644 = vunpack.c.l.b16 %v445
        %v645 = vunpack.c.l.b16 %v446
        %v646 = vunpack.c.l.b16 %v447
        %v647 = vunpack.c.l.b16 %v448
        %v648 = vunpack.c.l.b16 %v449
        %v649 = vunpack.c.l.b16 %v450
        %v650 = vunpack.c.l.b16 %v451
        %v651 = vunpack.c.l.b16 %v452
        %v652 = vunpack.c.l.b16 %v453
        %v653 = vunpack.c.l.b16 %v454
        %v654 = vunpack.c.l.b16 %v455
        %v655 = vunpack.c.l.b16 %v456
        %v656 = vunpack.c.l.b16 %v457
        %v657 = vunpack.c.l.b16 %v458
        %v658 = vunpack.c.l.b16 %v459
        %v659 = vunpack.c.l.b16 %v460
        %v660 = vunpack.c.l.b16 %v461
        %v661 = vunpack.c.l.b16 %v462
        %v662 = vunpack.c.l.b16 %v463
        %v663 = vunpack.c.l.b16 %v464
        %v664 = vunpack.c.l.b16 %v465
        %v665 = vunpack.c.l.b16 %v466
        %v666 = vunpack.c.l.b16 %v467
        %v667 = vunpack.c.l.b16 %v468
        %v668 = vunpack.c.l.b16 %v469
        %v669 = vunpack.c.l.b16 %v470
        %v670 = vunpack.c.l.b16 %v471
        %v671 = vunpack.c.l.b16 %v472
        %v672 = vunpack.c.l.b16 %v473
        %v673 = vunpack.c.l.b16 %v474
        %v674 = vunpack.c.l.b16 %v475
        %v675 = vunpack.c.l.b16 %v476
        %v676 = vunpack.c.l.b16 %v477
        %v677 = vunpack.c.l.b16 %v478
        %v678 = vunpack.c.l.b16 %v479
        %v679 = vunpack.c.l.b16 %v480
        %v680 = vunpack.c.l.b16 %v481
        %v681 = vunpack.c.l.b16 %v482
        %v682 = vunpack.c.l.b16 %v483
        %v683 = vunpack.c.l.b16 %v484
        %v684 = vunpack.c.l.b16 %v485
        %v685 = vunpack.c.l.b16 %v486
        %v686 = vunpack.c.l.b16 %v487
        %v687 = vunpack.c.l.b16 %v488
        %v688 = vunpack.c.l.b16 %v489
        %v689 = vunpack.c.l.b16 %v490
        %v690 = vunpack.c.l.b16 %v491
        %v691 = vunpack.c.l.b16 %v492
        %v692 = vunpack.c.l.b16 %v493
        %v693 = vunpack.c.l.b16 %v494
        %v694 = vunpack.c.l.b16 %v495
        %v695 = vunpack.c.l.b16 %v496
        %v696 = vunpack.c.l.b16 %v497
        %v697 = vunpack.c.l.b16 %v498
        %v698 = vpack.c.b16 %v603, %v602
        %v699 = vpack.c.b16 %v605, %v604
        %v700 = vpack.c.b16 %v607, %v606
        %v701 = vpack.c.b16 %v609, %v608
        %v702 = vpack.c.b16 %v611, %v610
        %v703 = vpack.c.b16 %v613, %v612
        %v704 = vpack.c.b16 %v615, %v614
        %v705 = vpack.c.b16 %v617, %v616
        %v706 = vpack.c.b16 %v619, %v618
        %v707 = vpack.c.b16 %v621, %v620
        %v708 = vpack.c.b16 %v623, %v622
        %v709 = vpack.c.b16 %v625, %v624
        %v710 = vpack.c.b16 %v627, %v626
        %v711 = vpack.c.b16 %v629, %v628
        %v712 = vpack.c.b16 %v631, %v630
        %v713 = vpack.c.b16 %v633, %v632
        %v714 = vpack.c.b16 %v635, %v634
        %v715 = vpack.c.b16 %v637, %v636
        %v716 = vpack.c.b16 %v639, %v638
        %v717 = vpack.c.b16 %v641, %v640
        %v718 = vpack.c.b16 %v643, %v642
        %v719 = vpack.c.b16 %v645, %v644
        %v720 = vpack.c.b16 %v647, %v646
        %v721 = vpack.c.b16 %v649, %v648
        %v722 = vpack.c.b16 %v651, %v650
        %v723 = vpack.c.b16 %v653, %v652
        %v724 = vpack.c.b16 %v655, %v654
        %v725 = vpack.c.b16 %v657, %v656
        %v726 = vpack.c.b16 %v659, %v658
        %v727 = vpack.c.b16 %v661, %v660
        %v728 = vpack.c.b16 %v663, %v662
        %v729 = vpack.c.b16 %v665, %v664
        %v730 = vpack.c.b16 %v667, %v666
        %v731 = vpack.c.b16 %v669, %v668
        %v732 = vpack.c.b16 %v671, %v670
        %v733 = vpack.c.b16 %v673, %v672
        %v734 = vpack.c.b16 %v675, %v674
        %v735 = vpack.c.b16 %v677, %v676
        %v736 = vpack.c.b16 %v679, %v678
        %v737 = vpack.c.b16 %v681, %v680
        %v738 = vpack.c.b16 %v683, %v682
        %v739 = vpack.c.b16 %v685, %v684
        %v740 = vpack.c.b16 %v687, %v686
        %v741 = vpack.c.b16 %v689, %v688
        %v742 = vpack.c.b16 %v691, %v690
        %v743 = vpack.c.b16 %v693, %v692
        %v744 = vpack.c.b16 %v695, %v694
        %v745 = vpack.c.b16 %v697, %v696
        %794 = vmatprep.subr.bf16.mxu0 0
        %795 = vmatpush1.bf16.msra.mxu0 %v698
        %796 = vmatprep.subr.bf16.mxu0 0
        %797 = vmatpush1.bf16.msra.mxu0 %v699
        %798 = vmatprep.subr.bf16.mxu0 0
        %799 = vmatpush1.bf16.msra.mxu0 %v700
        %800 = vmatprep.subr.bf16.mxu0 0
        %801 = vmatpush1.bf16.msra.mxu0 %v701
        %802 = vmatprep.subr.bf16.mxu0 0
        %803 = vmatpush1.bf16.msra.mxu0 %v702
        %804 = vmatprep.subr.bf16.mxu0 0
        %805 = vmatpush1.bf16.msra.mxu0 %v703
        %806 = vmatprep.subr.bf16.mxu0 0
        %807 = vmatpush1.bf16.msra.mxu0 %v704
        %808 = vmatprep.subr.bf16.mxu0 0
        %809 = vmatpush1.bf16.msra.mxu0 %v705
        %810 = vmatprep.subr.bf16.mxu0 0
        %811 = vmatpush1.bf16.msra.mxu0 %v706
        %812 = vmatprep.subr.bf16.mxu0 0
        %813 = vmatpush1.bf16.msra.mxu0 %v707
        %814 = vmatprep.subr.bf16.mxu0 0
        %815 = vmatpush1.bf16.msra.mxu0 %v708
        %816 = vmatprep.subr.bf16.mxu0 0
        %817 = vmatpush1.bf16.msra.mxu0 %v709
        %818 = vmatprep.subr.bf16.mxu0 0
        %819 = vmatpush1.bf16.msra.mxu0 %v710
        %820 = vmatprep.subr.bf16.mxu0 0
        %821 = vmatpush1.bf16.msra.mxu0 %v711
        %822 = vmatprep.subr.bf16.mxu0 0
        %823 = vmatpush1.bf16.msra.mxu0 %v712
        %824 = vmatprep.subr.bf16.mxu0 0
        %825 = vmatpush1.bf16.msra.mxu0 %v713
        %826 = vmatprep.mubr.bf16.mxu0 %v398
        %827 = vmatmul.mubr.bf16.gmra.mrb[0].mxu0 %v397
        %v828 = vpop.f32.mrb[0].mxu0
        %v829 = vadd.f32 %v504, %v828
        %v830 = vpop.f32.mrb[0].mxu0
        %v831 = vpop.f32.mrb[0].mxu0
        %v832 = vpop.f32.mrb[0].mxu0
        %833 = vdwg.mxu0
        %834 = vmatprep.subr.bf16.mxu0 0
        %835 = vmatpush1.bf16.msra.mxu0 %v714
        %836 = vmatprep.subr.bf16.mxu0 0
        %837 = vmatpush1.bf16.msra.mxu0 %v715
        %838 = vmatprep.subr.bf16.mxu0 0
        %839 = vmatpush1.bf16.msra.mxu0 %v716
        %840 = vmatprep.subr.bf16.mxu0 0
        %841 = vmatpush1.bf16.msra.mxu0 %v717
        %842 = vmatprep.subr.bf16.mxu0 0
        %843 = vmatpush1.bf16.msra.mxu0 %v718
        %844 = vmatprep.subr.bf16.mxu0 0
        %845 = vmatpush1.bf16.msra.mxu0 %v719
        %846 = vmatprep.subr.bf16.mxu0 0
        %847 = vmatpush1.bf16.msra.mxu0 %v720
        %848 = vmatprep.subr.bf16.mxu0 0
        %849 = vmatpush1.bf16.msra.mxu0 %v721
        %850 = vmatprep.subr.bf16.mxu0 0
        %851 = vmatpush1.bf16.msra.mxu0 %v722
        %852 = vmatprep.subr.bf16.mxu0 0
        %853 = vmatpush1.bf16.msra.mxu0 %v723
        %854 = vmatprep.subr.bf16.mxu0 0
        %855 = vmatpush1.bf16.msra.mxu0 %v724
        %856 = vmatprep.subr.bf16.mxu0 0
        %857 = vmatpush1.bf16.msra.mxu0 %v725
        %858 = vmatprep.subr.bf16.mxu0 0
        %859 = vmatpush1.bf16.msra.mxu0 %v726
        %860 = vmatprep.subr.bf16.mxu0 0
        %861 = vmatpush1.bf16.msra.mxu0 %v727
        %862 = vmatprep.subr.bf16.mxu0 0
        %863 = vmatpush1.bf16.msra.mxu0 %v728
        %864 = vmatprep.subr.bf16.mxu0 0
        %865 = vmatpush1.bf16.msra.mxu0 %v729
        %866 = vmatprep.mubr.bf16.mxu0 %v400
        %867 = vmatmul.mubr.bf16.gmra.mrb[0].mxu0 %v399
        %v868 = vpop.f32.mrb[0].mxu0
        %v869 = vadd.f32 %v829, %v868
        %v870 = vpop.f32.mrb[0].mxu0
        %v871 = vpop.f32.mrb[0].mxu0
        %v872 = vpop.f32.mrb[0].mxu0
        %873 = vdwg.mxu0
        %874 = vmatprep.subr.bf16.mxu0 0
        %875 = vmatpush1.bf16.msra.mxu0 %v730
        %876 = vmatprep.subr.bf16.mxu0 0
        %877 = vmatpush1.bf16.msra.mxu0 %v731
        %878 = vmatprep.subr.bf16.mxu0 0
        %879 = vmatpush1.bf16.msra.mxu0 %v732
        %880 = vmatprep.subr.bf16.mxu0 0
        %881 = vmatpush1.bf16.msra.mxu0 %v733
        %882 = vmatprep.subr.bf16.mxu0 0
        %883 = vmatpush1.bf16.msra.mxu0 %v734
        %884 = vmatprep.subr.bf16.mxu0 0
        %885 = vmatpush1.bf16.msra.mxu0 %v735
        %886 = vmatprep.subr.bf16.mxu0 0
        %887 = vmatpush1.bf16.msra.mxu0 %v736
        %888 = vmatprep.subr.bf16.mxu0 0
        %889 = vmatpush1.bf16.msra.mxu0 %v737
        %890 = vmatprep.subr.bf16.mxu0 0
        %891 = vmatpush1.bf16.msra.mxu0 %v738
        %892 = vmatprep.subr.bf16.mxu0 0
        %893 = vmatpush1.bf16.msra.mxu0 %v739
        %894 = vmatprep.subr.bf16.mxu0 0
        %895 = vmatpush1.bf16.msra.mxu0 %v740
        %896 = vmatprep.subr.bf16.mxu0 0
        %897 = vmatpush1.bf16.msra.mxu0 %v741
        %898 = vmatprep.subr.bf16.mxu0 0
        %899 = vmatpush1.bf16.msra.mxu0 %v742
        %900 = vmatprep.subr.bf16.mxu0 0
        %901 = vmatpush1.bf16.msra.mxu0 %v743
        %902 = vmatprep.subr.bf16.mxu0 0
        %903 = vmatpush1.bf16.msra.mxu0 %v744
        %904 = vmatprep.subr.bf16.mxu0 0
        %905 = vmatpush1.bf16.msra.mxu0 %v745
        %906 = vmatprep.mubr.bf16.mxu0 %v402
        %907 = vmatmul.mubr.bf16.gmra.mrb[0].mxu0 %v401
        %v908 = vpop.f32.mrb[0].mxu0
        %v909 = vadd.f32 %v869, %v908
        %v910 = vpop.f32.mrb[0].mxu0
        %v911 = vpop.f32.mrb[0].mxu0
        %v912 = vpop.f32.mrb[0].mxu0
        %913 = vdwg.mxu0
        %914 = vst [vmem:[%s157] sm:$0xff] %v909
        %s915 = sand.u32 %s76, 1
        %s916 = scalar_lea.sflag [#allocation10], %s915
        %s917 = sand.u32 %s76, 1
        %s918 = smul.addr %s917, 8
        %s919 = scalar_lea.vmem [#allocation13], %s918
        // Predicated region
        $region73: #{tpu_custom_call.1} parent=27 // pred_check
          %p920 = pneg %p86
        $region74: #{tpu_custom_call.1} parent=27 // pred_check_branch
          %922 = sbr.rel (%p920) target = $region76
        $region75: #{tpu_custom_call.1} parent=27 // pred_region
          %s924 = ssub.s32 128, 128
          %925 = vsyncadd %s916, %s924
          %s926 = smul.addr %s26, 128
          %s927 = scalar_lea.hbm %s5, %s926
          %s929 = sshll.u32 %s919, 4
          %s930 = int_to_ptr.vmem [resolvable:$true] %s929
          %932 = dma.vmem_to_hbm [thread:$0]  %s930, 128, %s927, %s916
        $region76: #{tpu_custom_call.1} parent=27 // pred_fallthru
          _
      $region28: #{tpu_custom_call.1} parent=5 // pred_fallthru
        _
      %p933 = scmp.le.s32.totalorder 2, %s21
      // Predicated region
      $region77: #{tpu_custom_call.1} parent=5 // pred_check
        %p934 = pneg %p933
      $region78: #{tpu_custom_call.1} parent=5 // pred_check_branch
        %936 = sbr.rel (%p934) target = $region80
      $region79: #{tpu_custom_call.1} parent=5 // pred_region
        %s937 = ssub.s32 %s21, 2
        // Predicated region
        $region81: #{tpu_custom_call.1} parent=79 // pred_check
          %p938 = pneg %p92
        $region82: #{tpu_custom_call.1} parent=79 // pred_check_branch
          %940 = sbr.rel (%p938) target = $region84
        $region83: #{tpu_custom_call.1} parent=79 // pred_region
          %s941 = sand.u32 %s77, 1
          %s942 = scalar_lea.sflag [#allocation10], %s941
          %s943 = sand.u32 %s77, 1
          %s944 = smul.addr %s943, 8
          %s945 = scalar_lea.vmem [#allocation13], %s944
          %946 = dma.done %s942, 128
        $region84: #{tpu_custom_call.1} parent=79 // pred_fallthru
          _
      $region80: #{tpu_custom_call.1} parent=5 // pred_fallthru
        _
    $region6: #{tpu_custom_call.1} parent=1 // loop_footer
      %s25 = sadd.s32 1, %s21
    $region7: #{tpu_custom_call.1} parent=1 // loop_footer_branch
      %20 = sbr.rel target = $region3
    $region8: #{tpu_custom_call.1} parent=1 // loop_exit
      _
    %947 = vsyncpa [#allocation9], 1
    %s948 = scalar_lea.sflag [#allocation9], 1
    %949 = vsyncpa %s948, 1
    %950 = vsyncpa [#allocation12], 1
    %951 = vsyncpa [#allocation10], 1
    %s952 = scalar_lea.sflag [#allocation10], 1
    %953 = vsyncpa %s952, 1
  %954 = vsyncmov [#allocation4]
  %s955 = vpop.sfrf %954
  %p956 = scmp.eq.s32.totalorder %s955, 0
  %p957 = pneg %p956
  %959 = shalt.err (%p957)
  %s960 = scalar_lea.sflag [#allocation4], 1
  %961 = vsyncmov %s960
  %s962 = vpop.sfrf %961
  %p963 = scmp.eq.s32.totalorder %s962, 0
  %p964 = pneg %p963
  %966 = shalt.err (%p964)
  %s967 = scalar_lea.sflag [#allocation4], 2
  %968 = vsyncmov %s967
  %s969 = vpop.sfrf %968
  %p970 = scmp.eq.s32.totalorder %s969, 0
  %p971 = pneg %p970
  %973 = shalt.err (%p971)
  %s974 = scalar_lea.sflag [#allocation4], 3
  %975 = vsyncmov %s974
  %s976 = vpop.sfrf %975
  %p977 = scmp.eq.s32.totalorder %s976, 0
  %p978 = pneg %p977
  %980 = shalt.err (%p978)
  %s981 = scalar_lea.sflag [#allocation4], 4
  %982 = vsyncmov %s981
  %s983 = vpop.sfrf %982
  %p984 = scmp.eq.s32.totalorder %s983, 0
  %p985 = pneg %p984
  %987 = shalt.err (%p985)
  %s988 = scalar_lea.sflag [#allocation4], 5
  %989 = vsyncmov %s988
  %s990 = vpop.sfrf %989
  %p991 = scmp.eq.s32.totalorder %s990, 0
  %p992 = pneg %p991
  %994 = shalt.err (%p992)
  %s995 = scalar_lea.sflag [#allocation4], 6
  %996 = vsyncmov %s995
  %s997 = vpop.sfrf %996
  %p998 = scmp.eq.s32.totalorder %s997, 0
  %p999 = pneg %p998
  %1001 = shalt.err (%p999)
  %s1002 = scalar_lea.sflag [#allocation4], 7
  %1003 = vsyncmov %s1002
  %s1004 = vpop.sfrf %1003
  %p1005 = scmp.eq.s32.totalorder %s1004, 0
  %p1006 = pneg %p1005
  %1008 = shalt.err (%p1006)
  %s1009 = scalar_lea.sflag [#allocation4], 8
  %1010 = vsyncmov %s1009
  %s1011 = vpop.sfrf %1010
  %p1012 = scmp.eq.s32.totalorder %s1011, 0
  %p1013 = pneg %p1012
  %1015 = shalt.err (%p1013)
  %s1016 = scalar_lea.sflag [#allocation4], 9
  %1017 = vsyncmov %s1016
  %s1018 = vpop.sfrf %1017
  %p1019 = scmp.eq.s32.totalorder %s1018, 0
  %p1020 = pneg %p1019
  %1022 = shalt.err (%p1020)
  %s1023 = scalar_lea.sflag [#allocation4], 10
  %1024 = vsyncmov %s1023
  %s1025 = vpop.sfrf %1024
  %p1026 = scmp.eq.s32.totalorder %s1025, 0
  %p1027 = pneg %p1026
  %1029 = shalt.err (%p1027)
  %s1030 = scalar_lea.sflag [#allocation4], 11
  %1031 = vsyncmov %s1030
  %s1032 = vpop.sfrf %1031
  %p1033 = scmp.eq.s32.totalorder %s1032, 0
  %p1034 = pneg %p1033
  %1036 = shalt.err (%p1034)
  %s1037 = scalar_lea.sflag [#allocation4], 12
  %1038 = vsyncmov %s1037
  %s1039 = vpop.sfrf %1038
  %p1040 = scmp.eq.s32.totalorder %s1039, 0
  %p1041 = pneg %p1040
  %1043 = shalt.err (%p1041)
  %s1044 = scalar_lea.sflag [#allocation4], 13
  %1045 = vsyncmov %s1044
  %s1046 = vpop.sfrf %1045
  %p1047 = scmp.eq.s32.totalorder %s1046, 0
  %p1048 = pneg %p1047
  %1050 = shalt.err (%p1048)
  %s1051 = scalar_lea.sflag [#allocation4], 14
  %1052 = vsyncmov %s1051
  %s1053 = vpop.sfrf %1052
  %p1054 = scmp.eq.s32.totalorder %s1053, 0
  %p1055 = pneg %p1054
  %1057 = shalt.err (%p1055)
  %s1058 = scalar_lea.sflag [#allocation4], 15
  %1059 = vsyncmov %s1058
  %s1060 = vpop.sfrf %1059
  %p1061 = scmp.eq.s32.totalorder %s1060, 0
  %p1062 = pneg %p1061
  %1064 = shalt.err (%p1062)
  %s1065 = scalar_lea.sflag [#allocation4], 16
  %1066 = vsyncmov %s1065
  %s1067 = vpop.sfrf %1066
  %p1068 = scmp.eq.s32.totalorder %s1067, 0
  %p1069 = pneg %p1068
  %1071 = shalt.err (%p1069)
  %s1072 = scalar_lea.sflag [#allocation4], 17
  %1073 = vsyncmov %s1072
  %s1074 = vpop.sfrf %1073
  %p1075 = scmp.eq.s32.totalorder %s1074, 0
  %p1076 = pneg %p1075
  %1078 = shalt.err (%p1076)
  %s1079 = scalar_lea.sflag [#allocation4], 18
  %1080 = vsyncmov %s1079
  %s1081 = vpop.sfrf %1080
  %p1082 = scmp.eq.s32.totalorder %s1081, 0
  %p1083 = pneg %p1082
  %1085 = shalt.err (%p1083)
  %s1086 = scalar_lea.sflag [#allocation4], 19
  %1087 = vsyncmov %s1086
  %s1088 = vpop.sfrf %1087
  %p1089 = scmp.eq.s32.totalorder %s1088, 0
  %p1090 = pneg %p1089
  %1092 = shalt.err (%p1090)
  %s1093 = scalar_lea.sflag [#allocation4], 20
  %1094 = vsyncmov %s1093
  %s1095 = vpop.sfrf %1094
  %p1096 = scmp.eq.s32.totalorder %s1095, 0
  %p1097 = pneg %p1096
  %1099 = shalt.err (%p1097)
  %s1100 = scalar_lea.sflag [#allocation4], 21
  %1101 = vsyncmov %s1100
  %s1102 = vpop.sfrf %1101
  %p1103 = scmp.eq.s32.totalorder %s1102, 0
  %p1104 = pneg %p1103
  %1106 = shalt.err (%p1104)
  %s1107 = scalar_lea.sflag [#allocation4], 22
  %1108 = vsyncmov %s1107
  %s1109 = vpop.sfrf %1108
  %p1110 = scmp.eq.s32.totalorder %s1109, 0
  %p1111 = pneg %p1110
  %1113 = shalt.err (%p1111)
  %s1114 = scalar_lea.sflag [#allocation4], 23
  %1115 = vsyncmov %s1114
  %s1116 = vpop.sfrf %1115
  %p1117 = scmp.eq.s32.totalorder %s1116, 0
  %p1118 = pneg %p1117
  %1120 = shalt.err (%p1118)
  %s1121 = scalar_lea.sflag [#allocation4], 24
  %1122 = vsyncmov %s1121
  %s1123 = vpop.sfrf %1122
  %p1124 = scmp.eq.s32.totalorder %s1123, 0
  %p1125 = pneg %p1124
  %1127 = shalt.err (%p1125)
  %s1128 = scalar_lea.sflag [#allocation4], 25
  %1129 = vsyncmov %s1128
  %s1130 = vpop.sfrf %1129
  %p1131 = scmp.eq.s32.totalorder %s1130, 0
  %p1132 = pneg %p1131
  %1134 = shalt.err (%p1132)
  %s1135 = scalar_lea.sflag [#allocation4], 26
  %1136 = vsyncmov %s1135
  %s1137 = vpop.sfrf %1136
  %p1138 = scmp.eq.s32.totalorder %s1137, 0
  %p1139 = pneg %p1138
  %1141 = shalt.err (%p1139)
  %s1142 = scalar_lea.sflag [#allocation4], 27
  %1143 = vsyncmov %s1142
  %s1144 = vpop.sfrf %1143
  %p1145 = scmp.eq.s32.totalorder %s1144, 0
  %p1146 = pneg %p1145
  %1148 = shalt.err (%p1146)
  %s1149 = scalar_lea.sflag [#allocation4], 28
  %1150 = vsyncmov %s1149
  %s1151 = vpop.sfrf %1150
  %p1152 = scmp.eq.s32.totalorder %s1151, 0
  %p1153 = pneg %p1152
  %1155 = shalt.err (%p1153)
  %s1156 = scalar_lea.sflag [#allocation4], 29
  %1157 = vsyncmov %s1156
  %s1158 = vpop.sfrf %1157
  %p1159 = scmp.eq.s32.totalorder %s1158, 0
  %p1160 = pneg %p1159
  %1162 = shalt.err (%p1160)
  %s1163 = scalar_lea.sflag [#allocation4], 30
  %1164 = vsyncmov %s1163
  %s1165 = vpop.sfrf %1164
  %p1166 = scmp.eq.s32.totalorder %s1165, 0
  %p1167 = pneg %p1166
  %1169 = shalt.err (%p1167)
  %s1170 = scalar_lea.sflag [#allocation4], 31
  %1171 = vsyncmov %s1170
  %s1172 = vpop.sfrf %1171
  %p1173 = scmp.eq.s32.totalorder %s1172, 0
  %p1174 = pneg %p1173
  %1176 = shalt.err (%p1174)
  %s1177 = scalar_lea.sflag [#allocation4], 32
  %1178 = vsyncmov %s1177
  %s1179 = vpop.sfrf %1178
  %p1180 = scmp.eq.s32.totalorder %s1179, 0
  %p1181 = pneg %p1180
  %1183 = shalt.err (%p1181)
  %s1184 = scalar_lea.sflag [#allocation4], 33
  %1185 = vsyncmov %s1184
  %s1186 = vpop.sfrf %1185
  %p1187 = scmp.eq.s32.totalorder %s1186, 0
  %p1188 = pneg %p1187
  %1190 = shalt.err (%p1188)
  %s1191 = scalar_lea.sflag [#allocation4], 34
  %1192 = vsyncmov %s1191
  %s1193 = vpop.sfrf %1192
  %p1194 = scmp.eq.s32.totalorder %s1193, 0
  %p1195 = pneg %p1194
  %1197 = shalt.err (%p1195)
  %s1198 = scalar_lea.sflag [#allocation4], 35
  %1199 = vsyncmov %s1198
  %s1200 = vpop.sfrf %1199
  %p1201 = scmp.eq.s32.totalorder %s1200, 0
  %p1202 = pneg %p1201
  %1204 = shalt.err (%p1202)
  %s1205 = scalar_lea.sflag [#allocation4], 36
  %1206 = vsyncmov %s1205
  %s1207 = vpop.sfrf %1206
  %p1208 = scmp.eq.s32.totalorder %s1207, 0
  %p1209 = pneg %p1208
  %1211 = shalt.err (%p1209)
  %s1212 = scalar_lea.sflag [#allocation4], 37
  %1213 = vsyncmov %s1212
  %s1214 = vpop.sfrf %1213
  %p1215 = scmp.eq.s32.totalorder %s1214, 0
  %p1216 = pneg %p1215
  %1218 = shalt.err (%p1216)
  %s1219 = scalar_lea.sflag [#allocation4], 38
  %1220 = vsyncmov %s1219
  %s1221 = vpop.sfrf %1220
  %p1222 = scmp.eq.s32.totalorder %s1221, 0
  %p1223 = pneg %p1222
  %1225 = shalt.err (%p1223)
  %s1226 = scalar_lea.sflag [#allocation4], 39
  %1227 = vsyncmov %s1226
  %s1228 = vpop.sfrf %1227
  %p1229 = scmp.eq.s32.totalorder %s1228, 0
  %p1230 = pneg %p1229
  %1232 = shalt.err (%p1230)
  %s1233 = scalar_lea.sflag [#allocation4], 40
  %1234 = vsyncmov %s1233
  %s1235 = vpop.sfrf %1234
  %p1236 = scmp.eq.s32.totalorder %s1235, 0
  %p1237 = pneg %p1236
  %1239 = shalt.err (%p1237)
  %s1240 = scalar_lea.sflag [#allocation4], 41
  %1241 = vsyncmov %s1240
  %s1242 = vpop.sfrf %1241
  %p1243 = scmp.eq.s32.totalorder %s1242, 0
  %p1244 = pneg %p1243
  %1246 = shalt.err (%p1244)
  %s1247 = scalar_lea.sflag [#allocation4], 42
  %1248 = vsyncmov %s1247
  %s1249 = vpop.sfrf %1248
  %p1250 = scmp.eq.s32.totalorder %s1249, 0
  %p1251 = pneg %p1250
  %1253 = shalt.err (%p1251)
  %s1254 = scalar_lea.sflag [#allocation4], 43
  %1255 = vsyncmov %s1254
  %s1256 = vpop.sfrf %1255
  %p1257 = scmp.eq.s32.totalorder %s1256, 0
  %p1258 = pneg %p1257
  %1260 = shalt.err (%p1258)
  %s1261 = scalar_lea.sflag [#allocation4], 44
  %1262 = vsyncmov %s1261
  %s1263 = vpop.sfrf %1262
  %p1264 = scmp.eq.s32.totalorder %s1263, 0
  %p1265 = pneg %p1264
  %1267 = shalt.err (%p1265)
  %s1268 = scalar_lea.sflag [#allocation4], 45
  %1269 = vsyncmov %s1268
  %s1270 = vpop.sfrf %1269
  %p1271 = scmp.eq.s32.totalorder %s1270, 0
  %p1272 = pneg %p1271
  %1274 = shalt.err (%p1272)
  %s1275 = scalar_lea.sflag [#allocation4], 46
  %1276 = vsyncmov %s1275
  %s1277 = vpop.sfrf %1276
  %p1278 = scmp.eq.s32.totalorder %s1277, 0
  %p1279 = pneg %p1278
  %1281 = shalt.err (%p1279)
  %s1282 = scalar_lea.sflag [#allocation4], 47
  %1283 = vsyncmov %s1282
  %s1284 = vpop.sfrf %1283
  %p1285 = scmp.eq.s32.totalorder %s1284, 0
  %p1286 = pneg %p1285
  %1288 = shalt.err (%p1286)
  %s1289 = scalar_lea.sflag [#allocation4], 48
  %1290 = vsyncmov %s1289
  %s1291 = vpop.sfrf %1290
  %p1292 = scmp.eq.s32.totalorder %s1291, 0
  %p1293 = pneg %p1292
  %1295 = shalt.err (%p1293)
  %s1296 = scalar_lea.sflag [#allocation4], 49
  %1297 = vsyncmov %s1296
  %s1298 = vpop.sfrf %1297
  %p1299 = scmp.eq.s32.totalorder %s1298, 0
  %p1300 = pneg %p1299
  %1302 = shalt.err (%p1300)
  %s1303 = scalar_lea.sflag [#allocation4], 50
  %1304 = vsyncmov %s1303
  %s1305 = vpop.sfrf %1304
  %p1306 = scmp.eq.s32.totalorder %s1305, 0
  %p1307 = pneg %p1306
  %1309 = shalt.err (%p1307)
  %s1310 = scalar_lea.sflag [#allocation4], 51
  %1311 = vsyncmov %s1310
  %s1312 = vpop.sfrf %1311
  %p1313 = scmp.eq.s32.totalorder %s1312, 0
  %p1314 = pneg %p1313
  %1316 = shalt.err (%p1314)
  %s1317 = scalar_lea.sflag [#allocation4], 52
  %1318 = vsyncmov %s1317
  %s1319 = vpop.sfrf %1318
  %p1320 = scmp.eq.s32.totalorder %s1319, 0
  %p1321 = pneg %p1320
  %1323 = shalt.err (%p1321)
  %s1324 = scalar_lea.sflag [#allocation4], 53
  %1325 = vsyncmov %s1324
  %s1326 = vpop.sfrf %1325
  %p1327 = scmp.eq.s32.totalorder %s1326, 0
  %p1328 = pneg %p1327
  %1330 = shalt.err (%p1328)
  %s1331 = scalar_lea.sflag [#allocation4], 54
  %1332 = vsyncmov %s1331
  %s1333 = vpop.sfrf %1332
  %p1334 = scmp.eq.s32.totalorder %s1333, 0
  %p1335 = pneg %p1334
  %1337 = shalt.err (%p1335)
  %s1338 = scalar_lea.sflag [#allocation4], 55
  %1339 = vsyncmov %s1338
  %s1340 = vpop.sfrf %1339
  %p1341 = scmp.eq.s32.totalorder %s1340, 0
  %p1342 = pneg %p1341
  %1344 = shalt.err (%p1342)
  %s1345 = scalar_lea.sflag [#allocation4], 56
  %1346 = vsyncmov %s1345
  %s1347 = vpop.sfrf %1346
  %p1348 = scmp.eq.s32.totalorder %s1347, 0
  %p1349 = pneg %p1348
  %1351 = shalt.err (%p1349)
  %s1352 = scalar_lea.sflag [#allocation4], 57
  %1353 = vsyncmov %s1352
  %s1354 = vpop.sfrf %1353
  %p1355 = scmp.eq.s32.totalorder %s1354, 0
  %p1356 = pneg %p1355
  %1358 = shalt.err (%p1356)
  %s1359 = scalar_lea.sflag [#allocation4], 58
  %1360 = vsyncmov %s1359
  %s1361 = vpop.sfrf %1360
  %p1362 = scmp.eq.s32.totalorder %s1361, 0
  %p1363 = pneg %p1362
  %1365 = shalt.err (%p1363)
  %s1366 = scalar_lea.sflag [#allocation4], 59
  %1367 = vsyncmov %s1366
  %s1368 = vpop.sfrf %1367
  %p1369 = scmp.eq.s32.totalorder %s1368, 0
  %p1370 = pneg %p1369
  %1372 = shalt.err (%p1370)
  %s1373 = scalar_lea.sflag [#allocation4], 60
  %1374 = vsyncmov %s1373
  %s1375 = vpop.sfrf %1374
  %p1376 = scmp.eq.s32.totalorder %s1375, 0
  %p1377 = pneg %p1376
  %1379 = shalt.err (%p1377)
  %s1380 = scalar_lea.sflag [#allocation4], 61
  %1381 = vsyncmov %s1380
  %s1382 = vpop.sfrf %1381
  %p1383 = scmp.eq.s32.totalorder %s1382, 0
  %p1384 = pneg %p1383
  %1386 = shalt.err (%p1384)
  %s1387 = scalar_lea.sflag [#allocation4], 62
  %1388 = vsyncmov %s1387
  %s1389 = vpop.sfrf %1388
  %p1390 = scmp.eq.s32.totalorder %s1389, 0
  %p1391 = pneg %p1390
  %1393 = shalt.err (%p1391)
  %s1394 = scalar_lea.sflag [#allocation4], 63
  %1395 = vsyncmov %s1394
  %s1396 = vpop.sfrf %1395
  %p1397 = scmp.eq.s32.totalorder %s1396, 0
  %p1398 = pneg %p1397
  %1400 = shalt.err (%p1398)

</llo_original>
